<compile_context>
chip_gen: v6e
topology: v6e:2x2x1
jax: 0.10.0
libtpu: 0.0.40
codegen_flags: <defaults>
</compile_context>

<pallas_src>
import functools

import jax
import jax.numpy as jnp
from jax import lax
from jax.experimental import pallas as pl
from jax.experimental.pallas import tpu as pltpu

LANE = 128


# ----------------------------- Pallas kernel -------------------------------


def simplecnn_kernel(
    x_ref,       # [TB, H+2, W, 3*Cin] bf16  (lane dim = dw-tap major, Cin minor)
    cw0_ref,     # [3*Cin, Fp]          bf16  (conv weight rows for dh=0)
    cw1_ref,     # [3*Cin, Fp]          bf16  (dh=1)
    cw2_ref,     # [3*Cin, Fp]          bf16  (dh=2)
    convb_ref,   # [1, Fp]              f32
    w1_ref,      # [Fp, D1p]            bf16
    b1_ref,      # [1, D1p]             f32
    w2_ref,      # [D1p, D2p]           bf16
    b2_ref,      # [1, D2p]             f32
    w3_ref,      # [D2p, Ep]            bf16
    b3_ref,      # [1, Ep]              f32
    wmixf_ref,   # [Fp, Cp]             bf16  (rows of wmix for backbone feat)
    wmixe_ref,   # [Ep, Cp]             bf16  (rows of wmix for embeddings)
    bmix_ref,    # [1, Cp]              f32
    emb_ref,     # out: [1, TB, Ep]     f32
    out_ref,     # out: [1, TB, Cp]     f32
    *, row_block,
):
    tb, hp, w, cin3 = x_ref.shape
    h = hp - 2
    rh = row_block
    nrb = h // rh
    fp = cw0_ref.shape[-1]
    n = tb * rh * w

    # Hoist conv weights / bias out of the row-block loop.
    cw = (cw0_ref[...], cw1_ref[...], cw2_ref[...])
    convb = convb_ref[...]

    # --- backbone: 3x3 conv (pad=1) -> ReLU -> GAP, row-blocked over H.
    # Each dh tap is a lane-aligned [N, 3*Cin] x [3*Cin, Fp] matmul (the dw
    # taps were folded into the lane dim by the wrapper); GAP accumulates a
    # [tb, Fp] f32 sum so the live f32 conv slab is O(rh*W*Fp), not O(H*W*Fp).
    def rb_body(rb, gap_acc):
        if isinstance(rb, int):
            r0 = rb * rh
        else:
            r0 = pl.multiple_of(rb * rh, rh)
        conv = jnp.dot(
            x_ref[:, pl.ds(r0 + 0, rh), :, :].reshape(n, cin3), cw[0],
            preferred_element_type=jnp.float32)
        conv = conv + jnp.dot(
            x_ref[:, pl.ds(r0 + 1, rh), :, :].reshape(n, cin3), cw[1],
            preferred_element_type=jnp.float32)
        conv = conv + jnp.dot(
            x_ref[:, pl.ds(r0 + 2, rh), :, :].reshape(n, cin3), cw[2],
            preferred_element_type=jnp.float32)
        conv = jnp.maximum(conv + convb, 0.0)                 # [N, Fp] f32
        return gap_acc + conv.reshape(tb, rh * w, fp).sum(axis=1)

    gap0 = jnp.zeros((tb, fp), jnp.float32)
    if nrb == 1:
        gap = rb_body(0, gap0)                                # all-static slices
    else:
        gap = lax.fori_loop(0, nrb, rb_body, gap0)

    # Global average pool: sum + compile-time 1/P scale (no runtime divide).
    feat = gap * (1.0 / (h * w))                              # [TB, Fp] f32
    feat_b = feat.astype(jnp.bfloat16)

    # --- head_1: MLP (fc1 -> ReLU -> fc2 -> ReLU -> fc3); dropout = identity,
    #     with_bn = False. bf16 operands, f32 accumulation, f32 bias/ReLU. ---
    h1 = jnp.maximum(
        jnp.dot(feat_b, w1_ref[...], preferred_element_type=jnp.float32)
        + b1_ref[...], 0.0)
    h2 = jnp.maximum(
        jnp.dot(h1.astype(jnp.bfloat16), w2_ref[...],
                preferred_element_type=jnp.float32)
        + b2_ref[...], 0.0)
    emb = (jnp.dot(h2.astype(jnp.bfloat16), w3_ref[...],
                   preferred_element_type=jnp.float32)
           + b3_ref[...])                                     # [TB, Ep] f32

    # --- head_2: Linear(F+E, C) on cat([feat, emb]); the concat is folded into
    #     two matmuls against the pre-split weight (mathematically identical). ---
    out = (jnp.dot(feat_b, wmixf_ref[...], preferred_element_type=jnp.float32)
           + jnp.dot(emb.astype(jnp.bfloat16), wmixe_ref[...],
                     preferred_element_type=jnp.float32)
           + bmix_ref[...])                                   # [TB, Cp] f32

    # Dense stores: block last-two dims == full dims of the [n_tiles, tb, 128]
    # output arrays (reshaped to [B, 128] for free in the wrapper).
    emb_ref[...] = emb[None].astype(emb_ref.dtype)
    out_ref[...] = out[None].astype(out_ref.dtype)


# ----------------------------- Wrapper / glue --------------------------------


def _round_up(n, m=LANE):
    return ((n + m - 1) // m) * m


def _pad2(a, rows, cols):
    return jnp.pad(a, ((0, rows - a.shape[0]), (0, cols - a.shape[1])))


def prepare_params(params, weight_dtype=jnp.bfloat16):
    """Pad all weight/bias widths to 128 lanes (exact: zeros propagate zeros),
    cast matmul operands to bf16, keep biases f32, pre-split wmix and the
    conv weight into its 3 dh row blocks (K order = (dh, dw, cin))."""
    convw, convb, w1, b1, w2, b2, w3, b3, wmix, bmix = params
    kh, kw, cin, f = convw.shape
    d1, d2 = w1.shape[1], w2.shape[1]
    e, c = w3.shape[1], wmix.shape[1]
    fp, d1p, d2p, ep, cp = (_round_up(v) for v in (f, d1, d2, e, c))

    convw_flat = convw.reshape(kh * kw * cin, f)              # rows: (dh, dw, c)
    convw_p = jnp.pad(convw_flat, ((0, 0), (0, fp - f))).astype(weight_dtype)
    cw0, cw1, cw2 = (convw_p[dh * kw * cin:(dh + 1) * kw * cin]
                     for dh in range(kh))
    convb_p = _pad2(convb[None, :], 1, fp)                    # f32
    w1_p = _pad2(w1, fp, d1p).astype(weight_dtype)
    b1_p = _pad2(b1[None, :], 1, d1p)
    w2_p = _pad2(w2, d1p, d2p).astype(weight_dtype)
    b2_p = _pad2(b2[None, :], 1, d2p)
    w3_p = _pad2(w3, d2p, ep).astype(weight_dtype)
    b3_p = _pad2(b3[None, :], 1, ep)
    wmixf_p = _pad2(wmix[:f], fp, cp).astype(weight_dtype)
    wmixe_p = _pad2(wmix[f:], ep, cp).astype(weight_dtype)
    bmix_p = _pad2(bmix[None, :], 1, cp)
    return (cw0, cw1, cw2, convb_p, w1_p, b1_p, w2_p, b2_p, w3_p, b3_p,
            wmixf_p, wmixe_p, bmix_p)


def _auto_batch_tile(B, cap=32):
    """Largest divisor of B that still leaves >= 2 grid steps (v7x megacore),
    capped so the per-step block stays modest."""
    hi = max(1, min(cap, B // 2)) if B >= 2 else 1
    for tb in range(hi, 0, -1):
        if B % tb == 0:
            return tb
    return 1


def _auto_row_block(H, W, tb, fp, budget_bytes=1 << 19):
    """Largest divisor of H keeping the live f32 conv slab under ~budget."""
    per_row = max(1, tb * W * fp * 4)
    cap = max(1, min(H, budget_bytes // per_row))
    for rh in range(cap, 0, -1):
        if H % rh == 0:
            return rh
    return 1


def simplecnn_forward(x_nchw, pparams, *, embedding_size, num_classes,
                      batch_tile=None, row_block=None):
    """Fused SimpleCNN forward: returns (embeddings [B,E], outputs [B,C])."""
    (cw0, cw1, cw2, convb, w1, b1, w2, b2, w3, b3,
     wmixf, wmixe, bmix) = pparams
    B, Cin, H, W = x_nchw.shape
    Fp = cw0.shape[-1]
    Ep = w3.shape[1]
    Cp = bmix.shape[1]

    tb = batch_tile if batch_tile is not None else _auto_batch_tile(B)
    assert B % tb == 0
    rh = row_block if row_block is not None else _auto_row_block(H, W, tb, Fp)
    assert H % rh == 0
    n_tiles = B // tb

    # NCHW -> NHWC (bf16), 1-px halo pad, fold the 3 W-direction tap shifts
    # into the lane/channel dim: xw[..., dw*Cin:(dw+1)*Cin] is the image
    # shifted by (dw-1) columns.  Shape [B, H+2, W, 3*Cin].
    # TODO(synk): this staging triples input HBM read traffic (worst on v5e);
    # a halo DMA + in-kernel pltpu.roll would remove it.
    x = jnp.transpose(x_nchw, (0, 2, 3, 1)).astype(jnp.bfloat16)
    xp = jnp.pad(x, ((0, 0), (1, 1), (1, 1), (0, 0)))
    xw = jnp.concatenate([xp[:, :, dw:dw + W, :] for dw in range(3)], axis=-1)

    weight_args = (cw0, cw1, cw2, convb, w1, b1, w2, b2, w3, b3,
                   wmixf, wmixe, bmix)

    def const_spec(a):
        nd = a.ndim
        return pl.BlockSpec(a.shape, lambda b, nd=nd: (0,) * nd)

    in_specs = [pl.BlockSpec((tb, H + 2, W, 3 * Cin),
                             lambda b: (b, 0, 0, 0))]
    in_specs += [const_spec(a) for a in weight_args]

    # Outputs shaped [n_tiles, tb, 128-lane]: each grid step stores a block
    # whose last two dims equal the full dims (dense, unmasked vst); the
    # wrapper reshape to [B, 128] is a free contiguous view.
    out_specs = (pl.BlockSpec((1, tb, Ep), lambda b: (b, 0, 0)),
                 pl.BlockSpec((1, tb, Cp), lambda b: (b, 0, 0)))
    out_shape = (jax.ShapeDtypeStruct((n_tiles, tb, Ep), jnp.float32),
                 jax.ShapeDtypeStruct((n_tiles, tb, Cp), jnp.float32))

    # Advisory cost estimate + explicit VMEM sizing for the chosen tile.
    d1p, d2p = w1.shape[1], w2.shape[1]
    flops = int(2 * B * H * W * (9 * Cin) * Fp
                + 2 * B * (Fp * d1p + d1p * d2p + d2p * Ep + Fp * Cp + Ep * Cp))
    weight_bytes = sum(int(a.size) * a.dtype.itemsize for a in weight_args)
    bytes_accessed = int(xw.size) * 2 + weight_bytes + B * (Ep + Cp) * 4
    x_block_bytes = tb * (H + 2) * W * 3 * Cin * 2
    out_block_bytes = tb * (Ep + Cp) * 4
    conv_live_bytes = tb * rh * W * (Fp * 4 + 3 * 3 * Cin * 2)
    vmem_est = (2 * (x_block_bytes + weight_bytes + out_block_bytes)
                + 2 * conv_live_bytes)
    vmem_limit = int(min(max(2 * vmem_est, 8 << 20), 64 << 20))

    kernel = functools.partial(simplecnn_kernel, row_block=rh)

    emb_p, out_p = pl.pallas_call(
        kernel,
        grid=(n_tiles,),
        in_specs=in_specs,
        out_specs=out_specs,
        out_shape=out_shape,
        compiler_params=pltpu.CompilerParams(
            dimension_semantics=("parallel",),     # batch tiles -> both v7x TCs
            vmem_limit_bytes=vmem_limit),
        cost_estimate=pl.CostEstimate(flops=flops, transcendentals=0,
                                      bytes_accessed=bytes_accessed),
    )(xw, *weight_args)

    emb_p = emb_p.reshape(B, Ep)
    out_p = out_p.reshape(B, Cp)
    return emb_p[:, :embedding_size], out_p[:, :num_classes]


# ----------------------------- Reference & init ------------------------------


def init_params(key, in_chans, num_features, embedding_size, num_classes):
    ks = jax.random.split(key, 10)
    s = 0.05
    d1, d2 = num_features // 2, num_features // 4
    convw = s * jax.random.normal(ks[0], (3, 3, in_chans, num_features), jnp.float32)
    convb = s * jax.random.normal(ks[1], (num_features,), jnp.float32)
    w1 = s * jax.random.normal(ks[2], (num_features, d1), jnp.float32)
    b1 = s * jax.random.normal(ks[3], (d1,), jnp.float32)
    w2 = s * jax.random.normal(ks[4], (d1, d2), jnp.float32)
    b2 = s * jax.random.normal(ks[5], (d2,), jnp.float32)
    w3 = s * jax.random.normal(ks[6], (d2, embedding_size), jnp.float32)
    b3 = s * jax.random.normal(ks[7], (embedding_size,), jnp.float32)
    wmix = s * jax.random.normal(
        ks[8], (num_features + embedding_size, num_classes), jnp.float32)
    bmix = s * jax.random.normal(ks[9], (num_classes,), jnp.float32)
    return convw, convb, w1, b1, w2, b2, w3, b3, wmix, bmix


def reference_forward(x_nchw, params):
    """Pure-JAX reference mirroring the PyTorch forward (eval mode) with the
    same bf16-operand / f32-accumulation mixed precision as the kernel."""
    convw, convb, w1, b1, w2, b2, w3, b3, wmix, bmix = params
    bf = lambda a: a.astype(jnp.bfloat16)
    mdot = lambda a, b: jnp.dot(bf(a), bf(b), preferred_element_type=jnp.float32)

    B, Cin, H, W = x_nchw.shape
    F = convw.shape[-1]
    x = jnp.transpose(x_nchw, (0, 2, 3, 1))
    xp = jnp.pad(x, ((0, 0), (1, 1), (1, 1), (0, 0)))
    cols = [xp[:, dh:dh + H, dw:dw + W, :]
            for dh in range(3) for dw in range(3)]
    patches = jnp.concatenate(cols, axis=-1).reshape(B, H * W, 9 * Cin)
    conv = jnp.einsum("bpk,kf->bpf", bf(patches),
                      bf(convw.reshape(9 * Cin, F)),
                      preferred_element_type=jnp.float32)
    conv = jnp.maximum(conv + convb[None, None, :], 0.0)
    feat = jnp.mean(conv, axis=1)                               # [B, F]
    h1 = jnp.maximum(mdot(feat, w1) + b1[None, :], 0.0)
    h2 = jnp.maximum(mdot(h1, w2) + b2[None, :], 0.0)
    emb = mdot(h2, w3) + b3[None, :]
    mix = jnp.concatenate([feat, emb], axis=1)
    out = mdot(mix, wmix) + bmix[None, :]
    return emb, out


if __name__ == "__main__":
    # Small shapes consistent with the module.
    B, Cin, H, W = 2, 4, 16, 16          # input x: NCHW
    num_features = 32                    # backbone.num_features
    embedding_size = 16                  # config.default.embedding_size
    num_classes = 8                      # config.default.n_classes

    key = jax.random.PRNGKey(0)
    kx, kp, kl = jax.random.split(key, 3)

    x_nchw = jax.random.normal(kx, (B, Cin, H, W), jnp.float32)
    label = jax.random.randint(kl, (B,), 0, num_classes)  # unused (no metric loss)

    params = init_params(kp, Cin, num_features, embedding_size, num_classes)
    pparams = prepare_params(params)

    emb, out = simplecnn_forward(x_nchw, pparams,
                                 embedding_size=embedding_size,
                                 num_classes=num_classes)
    jax.block_until_ready((emb, out))

    emb_ref, out_ref = reference_forward(x_nchw, params)
    assert emb.shape == (B, embedding_size) and out.shape == (B, num_classes)
    assert jnp.allclose(emb, emb_ref, atol=1e-3, rtol=1e-2), "embeddings mismatch"
    assert jnp.allclose(out, out_ref, atol=1e-3, rtol=1e-2), "outputs mismatch"

    print("KERNEL_OK")
</pallas_src>

<mosaic_0001>
module attributes {stable_mosaic.version = 11 : i64} {
  func.func @simplecnn_kernel(%arg0: i32, %arg1: memref<1x18x16x12xbf16, #tpu.memory_space<vmem>>, %arg2: memref<12x128xbf16, #tpu.memory_space<vmem>>, %arg3: memref<12x128xbf16, #tpu.memory_space<vmem>>, %arg4: memref<12x128xbf16, #tpu.memory_space<vmem>>, %arg5: memref<1x128xf32, #tpu.memory_space<vmem>>, %arg6: memref<128x128xbf16, #tpu.memory_space<vmem>>, %arg7: memref<1x128xf32, #tpu.memory_space<vmem>>, %arg8: memref<128x128xbf16, #tpu.memory_space<vmem>>, %arg9: memref<1x128xf32, #tpu.memory_space<vmem>>, %arg10: memref<128x128xbf16, #tpu.memory_space<vmem>>, %arg11: memref<1x128xf32, #tpu.memory_space<vmem>>, %arg12: memref<128x128xbf16, #tpu.memory_space<vmem>>, %arg13: memref<128x128xbf16, #tpu.memory_space<vmem>>, %arg14: memref<1x128xf32, #tpu.memory_space<vmem>>, %arg15: memref<1x1x128xf32, #tpu.memory_space<vmem>>, %arg16: memref<1x1x128xf32, #tpu.memory_space<vmem>>) attributes {dimension_semantics = [#tpu.dimension_semantics<parallel>], iteration_bounds = array<i64: 2>, scalar_prefetch = 0 : i64, scratch_operands = 0 : i64, tpu.core_type = #tpu.core_type<tc>, window_params = [{transform_indices = @transform_0, window_bounds = array<i64: 1, 18, 16, 12>}, {pipeline_mode = #tpu.pipeline_mode<synchronous>, transform_indices = @transform_1, window_bounds = array<i64: 12, 128>}, {pipeline_mode = #tpu.pipeline_mode<synchronous>, transform_indices = @transform_2, window_bounds = array<i64: 12, 128>}, {pipeline_mode = #tpu.pipeline_mode<synchronous>, transform_indices = @transform_3, window_bounds = array<i64: 12, 128>}, {pipeline_mode = #tpu.pipeline_mode<synchronous>, transform_indices = @transform_4, window_bounds = array<i64: 1, 128>}, {pipeline_mode = #tpu.pipeline_mode<synchronous>, transform_indices = @transform_5, window_bounds = array<i64: 128, 128>}, {pipeline_mode = #tpu.pipeline_mode<synchronous>, transform_indices = @transform_6, window_bounds = array<i64: 1, 128>}, {pipeline_mode = #tpu.pipeline_mode<synchronous>, transform_indices = @transform_7, window_bounds = array<i64: 128, 128>}, {pipeline_mode = #tpu.pipeline_mode<synchronous>, transform_indices = @transform_8, window_bounds = array<i64: 1, 128>}, {pipeline_mode = #tpu.pipeline_mode<synchronous>, transform_indices = @transform_9, window_bounds = array<i64: 128, 128>}, {pipeline_mode = #tpu.pipeline_mode<synchronous>, transform_indices = @transform_10, window_bounds = array<i64: 1, 128>}, {pipeline_mode = #tpu.pipeline_mode<synchronous>, transform_indices = @transform_11, window_bounds = array<i64: 128, 128>}, {pipeline_mode = #tpu.pipeline_mode<synchronous>, transform_indices = @transform_12, window_bounds = array<i64: 128, 128>}, {pipeline_mode = #tpu.pipeline_mode<synchronous>, transform_indices = @transform_13, window_bounds = array<i64: 1, 128>}, {transform_indices = @transform_14, window_bounds = array<i64: 1, 1, 128>}, {transform_indices = @transform_15, window_bounds = array<i64: 1, 1, 128>}]} {
    %c0 = arith.constant 0 : index
    %c0_0 = arith.constant 0 : index
    %0 = vector.load %arg2[%c0, %c0_0] : memref<12x128xbf16, #tpu.memory_space<vmem>>, vector<12x128xbf16>
    %c0_1 = arith.constant 0 : index
    %c0_2 = arith.constant 0 : index
    %1 = vector.load %arg3[%c0_1, %c0_2] : memref<12x128xbf16, #tpu.memory_space<vmem>>, vector<12x128xbf16>
    %c0_3 = arith.constant 0 : index
    %c0_4 = arith.constant 0 : index
    %2 = vector.load %arg4[%c0_3, %c0_4] : memref<12x128xbf16, #tpu.memory_space<vmem>>, vector<12x128xbf16>
    %c0_5 = arith.constant 0 : index
    %c0_6 = arith.constant 0 : index
    %3 = vector.load %arg5[%c0_5, %c0_6] : memref<1x128xf32, #tpu.memory_space<vmem>>, vector<1x128xf32>
    %cst = arith.constant 0.000000e+00 : f32
    %4 = vector.broadcast %cst : f32 to vector<1x128xf32>
    %c0_7 = arith.constant 0 : index
    %c0_8 = arith.constant 0 : index
    %c0_9 = arith.constant 0 : index
    %c0_10 = arith.constant 0 : index
    %5 = vector.load %arg1[%c0_7, %c0_8, %c0_9, %c0_10] : memref<1x18x16x12xbf16, #tpu.memory_space<vmem>>, vector<1x16x16x12xbf16>
    %6 = vector.shape_cast %5 : vector<1x16x16x12xbf16> to vector<256x12xbf16>
    %cst_11 = arith.constant dense<0.000000e+00> : vector<256x128xf32>
    %7 = tpu.matmul %6, %0, %cst_11 {dimension_numbers = #tpu.dot_dimension_numbers<[1], [0], [0], [1], [0, 0, 1, 1], [], []>} : vector<256x12xbf16>, vector<12x128xbf16>, vector<256x128xf32> -> vector<256x128xf32>
    %c0_12 = arith.constant 0 : index
    %c1 = arith.constant 1 : index
    %c0_13 = arith.constant 0 : index
    %c0_14 = arith.constant 0 : index
    %8 = vector.load %arg1[%c0_12, %c1, %c0_13, %c0_14] : memref<1x18x16x12xbf16, #tpu.memory_space<vmem>>, vector<1x16x16x12xbf16>
    %9 = vector.shape_cast %8 : vector<1x16x16x12xbf16> to vector<256x12xbf16>
    %cst_15 = arith.constant dense<0.000000e+00> : vector<256x128xf32>
    %10 = tpu.matmul %9, %1, %cst_15 {dimension_numbers = #tpu.dot_dimension_numbers<[1], [0], [0], [1], [0, 0, 1, 1], [], []>} : vector<256x12xbf16>, vector<12x128xbf16>, vector<256x128xf32> -> vector<256x128xf32>
    %11 = arith.addf %7, %10 : vector<256x128xf32>
    %c0_16 = arith.constant 0 : index
    %c2 = arith.constant 2 : index
    %c0_17 = arith.constant 0 : index
    %c0_18 = arith.constant 0 : index
    %12 = vector.load %arg1[%c0_16, %c2, %c0_17, %c0_18] : memref<1x18x16x12xbf16, #tpu.memory_space<vmem>>, vector<1x16x16x12xbf16>
    %13 = vector.shape_cast %12 : vector<1x16x16x12xbf16> to vector<256x12xbf16>
    %cst_19 = arith.constant dense<0.000000e+00> : vector<256x128xf32>
    %14 = tpu.matmul %13, %2, %cst_19 {dimension_numbers = #tpu.dot_dimension_numbers<[1], [0], [0], [1], [0, 0, 1, 1], [], []>} : vector<256x12xbf16>, vector<12x128xbf16>, vector<256x128xf32> -> vector<256x128xf32>
    %15 = arith.addf %11, %14 : vector<256x128xf32>
    %16 = vector.broadcast %3 : vector<1x128xf32> to vector<256x128xf32>
    %17 = arith.addf %15, %16 : vector<256x128xf32>
    %cst_20 = arith.constant 0.000000e+00 : f32
    %18 = vector.broadcast %cst_20 : f32 to vector<256x128xf32>
    %19 = arith.maximumf %17, %18 : vector<256x128xf32>
    %20 = vector.shape_cast %19 : vector<256x128xf32> to vector<1x256x128xf32>
    %cst_21 = arith.constant dense<0.000000e+00> : vector<1x128xf32>
    %21 = vector.multi_reduction <add>, %20, %cst_21 [1] : vector<1x256x128xf32> to vector<1x128xf32>
    %22 = arith.addf %4, %21 : vector<1x128xf32>
    %cst_22 = arith.constant 3.906250e-03 : f32
    %23 = vector.broadcast %cst_22 : f32 to vector<1x128xf32>
    %24 = arith.mulf %22, %23 : vector<1x128xf32>
    %25 = arith.truncf %24 : vector<1x128xf32> to vector<1x128xbf16>
    %c0_23 = arith.constant 0 : index
    %c0_24 = arith.constant 0 : index
    %26 = vector.load %arg6[%c0_23, %c0_24] : memref<128x128xbf16, #tpu.memory_space<vmem>>, vector<128x128xbf16>
    %cst_25 = arith.constant dense<0.000000e+00> : vector<1x128xf32>
    %27 = tpu.matmul %25, %26, %cst_25 {dimension_numbers = #tpu.dot_dimension_numbers<[1], [0], [0], [1], [0, 0, 1, 1], [], []>} : vector<1x128xbf16>, vector<128x128xbf16>, vector<1x128xf32> -> vector<1x128xf32>
    %c0_26 = arith.constant 0 : index
    %c0_27 = arith.constant 0 : index
    %28 = vector.load %arg7[%c0_26, %c0_27] : memref<1x128xf32, #tpu.memory_space<vmem>>, vector<1x128xf32>
    %29 = arith.addf %27, %28 : vector<1x128xf32>
    %cst_28 = arith.constant 0.000000e+00 : f32
    %30 = vector.broadcast %cst_28 : f32 to vector<1x128xf32>
    %31 = arith.maximumf %29, %30 : vector<1x128xf32>
    %32 = arith.truncf %31 : vector<1x128xf32> to vector<1x128xbf16>
    %c0_29 = arith.constant 0 : index
    %c0_30 = arith.constant 0 : index
    %33 = vector.load %arg8[%c0_29, %c0_30] : memref<128x128xbf16, #tpu.memory_space<vmem>>, vector<128x128xbf16>
    %cst_31 = arith.constant dense<0.000000e+00> : vector<1x128xf32>
    %34 = tpu.matmul %32, %33, %cst_31 {dimension_numbers = #tpu.dot_dimension_numbers<[1], [0], [0], [1], [0, 0, 1, 1], [], []>} : vector<1x128xbf16>, vector<128x128xbf16>, vector<1x128xf32> -> vector<1x128xf32>
    %c0_32 = arith.constant 0 : index
    %c0_33 = arith.constant 0 : index
    %35 = vector.load %arg9[%c0_32, %c0_33] : memref<1x128xf32, #tpu.memory_space<vmem>>, vector<1x128xf32>
    %36 = arith.addf %34, %35 : vector<1x128xf32>
    %cst_34 = arith.constant 0.000000e+00 : f32
    %37 = vector.broadcast %cst_34 : f32 to vector<1x128xf32>
    %38 = arith.maximumf %36, %37 : vector<1x128xf32>
    %39 = arith.truncf %38 : vector<1x128xf32> to vector<1x128xbf16>
    %c0_35 = arith.constant 0 : index
    %c0_36 = arith.constant 0 : index
    %40 = vector.load %arg10[%c0_35, %c0_36] : memref<128x128xbf16, #tpu.memory_space<vmem>>, vector<128x128xbf16>
    %cst_37 = arith.constant dense<0.000000e+00> : vector<1x128xf32>
    %41 = tpu.matmul %39, %40, %cst_37 {dimension_numbers = #tpu.dot_dimension_numbers<[1], [0], [0], [1], [0, 0, 1, 1], [], []>} : vector<1x128xbf16>, vector<128x128xbf16>, vector<1x128xf32> -> vector<1x128xf32>
    %c0_38 = arith.constant 0 : index
    %c0_39 = arith.constant 0 : index
    %42 = vector.load %arg11[%c0_38, %c0_39] : memref<1x128xf32, #tpu.memory_space<vmem>>, vector<1x128xf32>
    %43 = arith.addf %41, %42 : vector<1x128xf32>
    %c0_40 = arith.constant 0 : index
    %c0_41 = arith.constant 0 : index
    %44 = vector.load %arg12[%c0_40, %c0_41] : memref<128x128xbf16, #tpu.memory_space<vmem>>, vector<128x128xbf16>
    %cst_42 = arith.constant dense<0.000000e+00> : vector<1x128xf32>
    %45 = tpu.matmul %25, %44, %cst_42 {dimension_numbers = #tpu.dot_dimension_numbers<[1], [0], [0], [1], [0, 0, 1, 1], [], []>} : vector<1x128xbf16>, vector<128x128xbf16>, vector<1x128xf32> -> vector<1x128xf32>
    %46 = arith.truncf %43 : vector<1x128xf32> to vector<1x128xbf16>
    %c0_43 = arith.constant 0 : index
    %c0_44 = arith.constant 0 : index
    %47 = vector.load %arg13[%c0_43, %c0_44] : memref<128x128xbf16, #tpu.memory_space<vmem>>, vector<128x128xbf16>
    %cst_45 = arith.constant dense<0.000000e+00> : vector<1x128xf32>
    %48 = tpu.matmul %46, %47, %cst_45 {dimension_numbers = #tpu.dot_dimension_numbers<[1], [0], [0], [1], [0, 0, 1, 1], [], []>} : vector<1x128xbf16>, vector<128x128xbf16>, vector<1x128xf32> -> vector<1x128xf32>
    %49 = arith.addf %45, %48 : vector<1x128xf32>
    %c0_46 = arith.constant 0 : index
    %c0_47 = arith.constant 0 : index
    %50 = vector.load %arg14[%c0_46, %c0_47] : memref<1x128xf32, #tpu.memory_space<vmem>>, vector<1x128xf32>
    %51 = arith.addf %49, %50 : vector<1x128xf32>
    %52 = vector.shape_cast %43 : vector<1x128xf32> to vector<1x1x128xf32>
    %c0_48 = arith.constant 0 : index
    %c0_49 = arith.constant 0 : index
    %c0_50 = arith.constant 0 : index
    %53 = vector.load %arg15[%c0_48, %c0_49, %c0_50] : memref<1x1x128xf32, #tpu.memory_space<vmem>>, vector<1x1x128xf32>
    tpu.vector_store %arg15[%c0_48, %c0_49, %c0_50], %52 {strides = array<i32>} : memref<1x1x128xf32, #tpu.memory_space<vmem>>, vector<1x1x128xf32>,
    %54 = vector.shape_cast %51 : vector<1x128xf32> to vector<1x1x128xf32>
    %c0_51 = arith.constant 0 : index
    %c0_52 = arith.constant 0 : index
    %c0_53 = arith.constant 0 : index
    %55 = vector.load %arg16[%c0_51, %c0_52, %c0_53] : memref<1x1x128xf32, #tpu.memory_space<vmem>>, vector<1x1x128xf32>
    tpu.vector_store %arg16[%c0_51, %c0_52, %c0_53], %54 {strides = array<i32>} : memref<1x1x128xf32, #tpu.memory_space<vmem>>, vector<1x1x128xf32>,
    return
  }
  func.func @transform_0(%arg0: i32) -> (i32, i32, i32, i32) {
    %c0_i32 = arith.constant 0 : i32
    %c0_i32_0 = arith.constant 0 : i32
    %c0_i32_1 = arith.constant 0 : i32
    %c0_i32_2 = arith.constant 0 : i32
    return %arg0, %c0_i32, %c0_i32_0, %c0_i32_1 : i32, i32, i32, i32
  }
  func.func @transform_1(%arg0: i32) -> (i32, i32) {
    %c0_i32 = arith.constant 0 : i32
    %c0_i32_0 = arith.constant 0 : i32
    %c0_i32_1 = arith.constant 0 : i32
    return %c0_i32, %c0_i32_0 : i32, i32
  }
  func.func @transform_2(%arg0: i32) -> (i32, i32) {
    %c0_i32 = arith.constant 0 : i32
    %c0_i32_0 = arith.constant 0 : i32
    %c0_i32_1 = arith.constant 0 : i32
    return %c0_i32, %c0_i32_0 : i32, i32
  }
  func.func @transform_3(%arg0: i32) -> (i32, i32) {
    %c0_i32 = arith.constant 0 : i32
    %c0_i32_0 = arith.constant 0 : i32
    %c0_i32_1 = arith.constant 0 : i32
    return %c0_i32, %c0_i32_0 : i32, i32
  }
  func.func @transform_4(%arg0: i32) -> (i32, i32) {
    %c0_i32 = arith.constant 0 : i32
    %c0_i32_0 = arith.constant 0 : i32
    %c0_i32_1 = arith.constant 0 : i32
    return %c0_i32, %c0_i32_0 : i32, i32
  }
  func.func @transform_5(%arg0: i32) -> (i32, i32) {
    %c0_i32 = arith.constant 0 : i32
    %c0_i32_0 = arith.constant 0 : i32
    %c0_i32_1 = arith.constant 0 : i32
    return %c0_i32, %c0_i32_0 : i32, i32
  }
  func.func @transform_6(%arg0: i32) -> (i32, i32) {
    %c0_i32 = arith.constant 0 : i32
    %c0_i32_0 = arith.constant 0 : i32
    %c0_i32_1 = arith.constant 0 : i32
    return %c0_i32, %c0_i32_0 : i32, i32
  }
  func.func @transform_7(%arg0: i32) -> (i32, i32) {
    %c0_i32 = arith.constant 0 : i32
    %c0_i32_0 = arith.constant 0 : i32
    %c0_i32_1 = arith.constant 0 : i32
    return %c0_i32, %c0_i32_0 : i32, i32
  }
  func.func @transform_8(%arg0: i32) -> (i32, i32) {
    %c0_i32 = arith.constant 0 : i32
    %c0_i32_0 = arith.constant 0 : i32
    %c0_i32_1 = arith.constant 0 : i32
    return %c0_i32, %c0_i32_0 : i32, i32
  }
  func.func @transform_9(%arg0: i32) -> (i32, i32) {
    %c0_i32 = arith.constant 0 : i32
    %c0_i32_0 = arith.constant 0 : i32
    %c0_i32_1 = arith.constant 0 : i32
    return %c0_i32, %c0_i32_0 : i32, i32
  }
  func.func @transform_10(%arg0: i32) -> (i32, i32) {
    %c0_i32 = arith.constant 0 : i32
    %c0_i32_0 = arith.constant 0 : i32
    %c0_i32_1 = arith.constant 0 : i32
    return %c0_i32, %c0_i32_0 : i32, i32
  }
  func.func @transform_11(%arg0: i32) -> (i32, i32) {
    %c0_i32 = arith.constant 0 : i32
    %c0_i32_0 = arith.constant 0 : i32
    %c0_i32_1 = arith.constant 0 : i32
    return %c0_i32, %c0_i32_0 : i32, i32
  }
  func.func @transform_12(%arg0: i32) -> (i32, i32) {
    %c0_i32 = arith.constant 0 : i32
    %c0_i32_0 = arith.constant 0 : i32
    %c0_i32_1 = arith.constant 0 : i32
    return %c0_i32, %c0_i32_0 : i32, i32
  }
  func.func @transform_13(%arg0: i32) -> (i32, i32) {
    %c0_i32 = arith.constant 0 : i32
    %c0_i32_0 = arith.constant 0 : i32
    %c0_i32_1 = arith.constant 0 : i32
    return %c0_i32, %c0_i32_0 : i32, i32
  }
  func.func @transform_14(%arg0: i32) -> (i32, i32, i32) {
    %c0_i32 = arith.constant 0 : i32
    %c0_i32_0 = arith.constant 0 : i32
    %c0_i32_1 = arith.constant 0 : i32
    return %arg0, %c0_i32, %c0_i32_0 : i32, i32, i32
  }
  func.func @transform_15(%arg0: i32) -> (i32, i32, i32) {
    %c0_i32 = arith.constant 0 : i32
    %c0_i32_0 = arith.constant 0 : i32
    %c0_i32_1 = arith.constant 0 : i32
    return %arg0, %c0_i32, %c0_i32_0 : i32, i32, i32
  }
}

</mosaic_0001>

<llo_original>
// kernel: tpu_custom_call.1
$region0: #{tpu_custom_call.1}
  #allocation0 [shape = 'u32[]', space=smem, size = 0x4, offset = 0x4, fixed_abs, tag = 'smem constant byte address 0x4 - core index']
  #allocation1 [shape = 'u32[144,128]{1,0:T(1,128)}', space=vmem, size = 0x12000, scoped, tag = 'internal scratch']
  %s0 = inlined_call_operand.vmem [shape: bf16[2,18,16,12], index: 0, kind: input, shape index: {}]
  %s1 = inlined_call_operand.vmem [shape: bf16[12,128], index: 1, kind: input, shape index: {}]
  %s2 = inlined_call_operand.vmem [shape: bf16[12,128], index: 2, kind: input, shape index: {}]
  %s3 = inlined_call_operand.vmem [shape: bf16[12,128], index: 3, kind: input, shape index: {}]
  %s4 = inlined_call_operand.vmem [shape: f32[1,128], index: 4, kind: input, shape index: {}]
  %s5 = inlined_call_operand.vmem [shape: bf16[128,128], index: 5, kind: input, shape index: {}]
  %s6 = inlined_call_operand.vmem [shape: f32[1,128], index: 6, kind: input, shape index: {}]
  %s7 = inlined_call_operand.vmem [shape: bf16[128,128], index: 7, kind: input, shape index: {}]
  %s8 = inlined_call_operand.vmem [shape: f32[1,128], index: 8, kind: input, shape index: {}]
  %s9 = inlined_call_operand.vmem [shape: bf16[128,128], index: 9, kind: input, shape index: {}]
  %s10 = inlined_call_operand.vmem [shape: f32[1,128], index: 10, kind: input, shape index: {}]
  %s11 = inlined_call_operand.vmem [shape: bf16[128,128], index: 11, kind: input, shape index: {}]
  %s12 = inlined_call_operand.vmem [shape: bf16[128,128], index: 12, kind: input, shape index: {}]
  %s13 = inlined_call_operand.vmem [shape: f32[1,128], index: 13, kind: input, shape index: {}]
  %s14 = inlined_call_operand.hbm [shape: f32[2,1,128], index: 14, kind: output, shape index: {0}]
  %s15 = inlined_call_operand.hbm [shape: f32[2,1,128], index: 15, kind: output, shape index: {1}]
  %16 = xla_tuple %s14, %s15
  %s17 = sld [smem:[#allocation0]]
  $region97: #{tpu_custom_call.1} parent=0
    _
  %s19 = ssub.s32 1, %s17
  %s20 = scalar_select 0, %s19, %s17
  $region1: #{tpu_custom_call.1} parent=0
    #allocation2 [shape = 'u8[1024]{0}', space=vmem, size = 0x400, scoped, tag = 'output window, operand 0']
    #allocation3 [shape = 's32[2]{0}', space=sflag, size = 0x8, scoped, tag = 'scoped memory for tpu_custom_call.1']
    #allocation4 [shape = 'u8[1024]{0}', space=vmem, size = 0x400, scoped, tag = 'output window, operand 1']
    #allocation5 [shape = 's32[2]{0}', space=sflag, size = 0x8, scoped, tag = 'scoped memory for tpu_custom_call.1']
    %21 = vsyncpa [#allocation3], 0
    %s22 = scalar_lea.sflag [#allocation3], 1
    %23 = vsyncpa %s22, 0
    %24 = vsyncpa [#allocation5], 0
    %s25 = scalar_lea.sflag [#allocation5], 1
    %26 = vsyncpa %s25, 0
    loop: start=0, step=1, limit=4
    $region2: #{tpu_custom_call.1} parent=1 // loop_pre_header
      _
    $region3: #{tpu_custom_call.1} parent=1 // loop_header
      %s28 = sphi 0, %s32
      %p29 = scmp.ge.s32.totalorder %s28, 4
      %s38 = sphi 0, %s40
      %s41 = sphi 0, %s38
      %s42 = sphi 0, %s41
      %s58 = sphi 0, %s42
      %s62 = sphi 0, %s62
      %s64 = sphi 0, %s62
      %s65 = sphi 0, %s64
      %s79 = sphi 0, %s65
      %s83 = sphi 0, %s83
      %s85 = sphi 0, %s83
      %s86 = sphi 0, %s85
      %s100 = sphi 0, %s86
      %s104 = sphi 0, %s104
      %s106 = sphi 0, %s104
      %s107 = sphi 0, %s106
      %s121 = sphi 0, %s107
      %s125 = sphi 0, %s125
      %s127 = sphi 0, %s125
      %s128 = sphi 0, %s127
      %s142 = sphi 0, %s128
      %s146 = sphi 0, %s146
      %s148 = sphi 0, %s146
      %s149 = sphi 0, %s148
      %s163 = sphi 0, %s149
      %s167 = sphi 0, %s167
      %s169 = sphi 0, %s167
      %s170 = sphi 0, %s169
      %s184 = sphi 0, %s170
      %s188 = sphi 0, %s188
      %s190 = sphi 0, %s188
      %s191 = sphi 0, %s190
      %s205 = sphi 0, %s191
      %s209 = sphi 0, %s209
      %s211 = sphi 0, %s209
      %s212 = sphi 0, %s211
      %s226 = sphi 0, %s212
      %s230 = sphi 0, %s230
      %s232 = sphi 0, %s230
      %s233 = sphi 0, %s232
      %s247 = sphi 0, %s233
      %s251 = sphi 0, %s251
      %s253 = sphi 0, %s251
      %s254 = sphi 0, %s253
      %s268 = sphi 0, %s254
      %s272 = sphi 0, %s272
      %s274 = sphi 0, %s272
      %s275 = sphi 0, %s274
      %s289 = sphi 0, %s275
      %s293 = sphi 0, %s293
      %s295 = sphi 0, %s293
      %s296 = sphi 0, %s295
      %s310 = sphi 0, %s296
      %s314 = sphi 0, %s314
      %s316 = sphi 0, %s314
      %s317 = sphi 0, %s316
      %s331 = sphi 0, %s317
      %s337 = sphi 0, %s339
      %s340 = sphi 0, %s337
      %s341 = sphi 0, %s340
      %s357 = sphi 0, %s341
      %s363 = sphi 0, %s365
      %s366 = sphi 0, %s363
      %s367 = sphi 0, %s366
      %s383 = sphi 0, %s367
    $region4: #{tpu_custom_call.1} parent=1 // loop_header_branch
      %31 = sbr.rel (%p29) target = $region8
    $region5: #{tpu_custom_call.1} parent=1 // loop_body
      %s33 = ssub.s32 %s28, 1
      %s34 = ssub.s32 %s28, 2
      %s35 = sadd.s32 %s28, 1
      %s36 = ssub.s32 %s28, %s35
      %p37 = scmp.eq.s32.totalorder %s36, 0
      %s39 = sadd.s32 %s38, 1
      %s40 = scalar_select %p37, %s38, %s39
      %p43 = pneg %p37
      %p44 = scmp.eq.s32.totalorder %s28, 1
      %p45 = por %p43, %p44
      %p46 = scmp.ne.s32.totalorder %s38, %s41
      %p47 = scmp.eq.s32.totalorder %s28, 0
      %p48 = por %p46, %p47
      %p49 = scmp.ne.s32.totalorder %s38, %s41
      %p50 = scmp.eq.s32.totalorder %s33, 1
      %p51 = por %p49, %p50
      %p52 = scmp.ne.s32.totalorder %s41, %s42
      %p53 = scmp.eq.s32.totalorder %s33, 0
      %p54 = por %p52, %p53
      %p55 = scmp.ne.s32.totalorder %s41, %s42
      %p56 = scmp.eq.s32.totalorder %s34, 1
      %p57 = por %p55, %p56
      %p59 = scmp.ne.s32.totalorder %s42, %s58
      %p60 = scmp.eq.s32.totalorder %s34, 0
      %p61 = por %p59, %p60
      %s63 = sadd.s32 %s62, 1
      %p66 = scmp.eq.s32.totalorder %s28, 1
      %p67 = scmp.ne.s32.totalorder %s62, %s64
      %p68 = scmp.eq.s32.totalorder %s28, 0
      %p69 = por %p67, %p68
      %p70 = scmp.ne.s32.totalorder %s62, %s64
      %p71 = scmp.eq.s32.totalorder %s33, 1
      %p72 = por %p70, %p71
      %p73 = scmp.ne.s32.totalorder %s64, %s65
      %p74 = scmp.eq.s32.totalorder %s33, 0
      %p75 = por %p73, %p74
      %p76 = scmp.ne.s32.totalorder %s64, %s65
      %p77 = scmp.eq.s32.totalorder %s34, 1
      %p78 = por %p76, %p77
      %p80 = scmp.ne.s32.totalorder %s65, %s79
      %p81 = scmp.eq.s32.totalorder %s34, 0
      %p82 = por %p80, %p81
      %s84 = sadd.s32 %s83, 1
      %p87 = scmp.eq.s32.totalorder %s28, 1
      %p88 = scmp.ne.s32.totalorder %s83, %s85
      %p89 = scmp.eq.s32.totalorder %s28, 0
      %p90 = por %p88, %p89
      %p91 = scmp.ne.s32.totalorder %s83, %s85
      %p92 = scmp.eq.s32.totalorder %s33, 1
      %p93 = por %p91, %p92
      %p94 = scmp.ne.s32.totalorder %s85, %s86
      %p95 = scmp.eq.s32.totalorder %s33, 0
      %p96 = por %p94, %p95
      %p97 = scmp.ne.s32.totalorder %s85, %s86
      %p98 = scmp.eq.s32.totalorder %s34, 1
      %p99 = por %p97, %p98
      %p101 = scmp.ne.s32.totalorder %s86, %s100
      %p102 = scmp.eq.s32.totalorder %s34, 0
      %p103 = por %p101, %p102
      %s105 = sadd.s32 %s104, 1
      %p108 = scmp.eq.s32.totalorder %s28, 1
      %p109 = scmp.ne.s32.totalorder %s104, %s106
      %p110 = scmp.eq.s32.totalorder %s28, 0
      %p111 = por %p109, %p110
      %p112 = scmp.ne.s32.totalorder %s104, %s106
      %p113 = scmp.eq.s32.totalorder %s33, 1
      %p114 = por %p112, %p113
      %p115 = scmp.ne.s32.totalorder %s106, %s107
      %p116 = scmp.eq.s32.totalorder %s33, 0
      %p117 = por %p115, %p116
      %p118 = scmp.ne.s32.totalorder %s106, %s107
      %p119 = scmp.eq.s32.totalorder %s34, 1
      %p120 = por %p118, %p119
      %p122 = scmp.ne.s32.totalorder %s107, %s121
      %p123 = scmp.eq.s32.totalorder %s34, 0
      %p124 = por %p122, %p123
      %s126 = sadd.s32 %s125, 1
      %p129 = scmp.eq.s32.totalorder %s28, 1
      %p130 = scmp.ne.s32.totalorder %s125, %s127
      %p131 = scmp.eq.s32.totalorder %s28, 0
      %p132 = por %p130, %p131
      %p133 = scmp.ne.s32.totalorder %s125, %s127
      %p134 = scmp.eq.s32.totalorder %s33, 1
      %p135 = por %p133, %p134
      %p136 = scmp.ne.s32.totalorder %s127, %s128
      %p137 = scmp.eq.s32.totalorder %s33, 0
      %p138 = por %p136, %p137
      %p139 = scmp.ne.s32.totalorder %s127, %s128
      %p140 = scmp.eq.s32.totalorder %s34, 1
      %p141 = por %p139, %p140
      %p143 = scmp.ne.s32.totalorder %s128, %s142
      %p144 = scmp.eq.s32.totalorder %s34, 0
      %p145 = por %p143, %p144
      %s147 = sadd.s32 %s146, 1
      %p150 = scmp.eq.s32.totalorder %s28, 1
      %p151 = scmp.ne.s32.totalorder %s146, %s148
      %p152 = scmp.eq.s32.totalorder %s28, 0
      %p153 = por %p151, %p152
      %p154 = scmp.ne.s32.totalorder %s146, %s148
      %p155 = scmp.eq.s32.totalorder %s33, 1
      %p156 = por %p154, %p155
      %p157 = scmp.ne.s32.totalorder %s148, %s149
      %p158 = scmp.eq.s32.totalorder %s33, 0
      %p159 = por %p157, %p158
      %p160 = scmp.ne.s32.totalorder %s148, %s149
      %p161 = scmp.eq.s32.totalorder %s34, 1
      %p162 = por %p160, %p161
      %p164 = scmp.ne.s32.totalorder %s149, %s163
      %p165 = scmp.eq.s32.totalorder %s34, 0
      %p166 = por %p164, %p165
      %s168 = sadd.s32 %s167, 1
      %p171 = scmp.eq.s32.totalorder %s28, 1
      %p172 = scmp.ne.s32.totalorder %s167, %s169
      %p173 = scmp.eq.s32.totalorder %s28, 0
      %p174 = por %p172, %p173
      %p175 = scmp.ne.s32.totalorder %s167, %s169
      %p176 = scmp.eq.s32.totalorder %s33, 1
      %p177 = por %p175, %p176
      %p178 = scmp.ne.s32.totalorder %s169, %s170
      %p179 = scmp.eq.s32.totalorder %s33, 0
      %p180 = por %p178, %p179
      %p181 = scmp.ne.s32.totalorder %s169, %s170
      %p182 = scmp.eq.s32.totalorder %s34, 1
      %p183 = por %p181, %p182
      %p185 = scmp.ne.s32.totalorder %s170, %s184
      %p186 = scmp.eq.s32.totalorder %s34, 0
      %p187 = por %p185, %p186
      %s189 = sadd.s32 %s188, 1
      %p192 = scmp.eq.s32.totalorder %s28, 1
      %p193 = scmp.ne.s32.totalorder %s188, %s190
      %p194 = scmp.eq.s32.totalorder %s28, 0
      %p195 = por %p193, %p194
      %p196 = scmp.ne.s32.totalorder %s188, %s190
      %p197 = scmp.eq.s32.totalorder %s33, 1
      %p198 = por %p196, %p197
      %p199 = scmp.ne.s32.totalorder %s190, %s191
      %p200 = scmp.eq.s32.totalorder %s33, 0
      %p201 = por %p199, %p200
      %p202 = scmp.ne.s32.totalorder %s190, %s191
      %p203 = scmp.eq.s32.totalorder %s34, 1
      %p204 = por %p202, %p203
      %p206 = scmp.ne.s32.totalorder %s191, %s205
      %p207 = scmp.eq.s32.totalorder %s34, 0
      %p208 = por %p206, %p207
      %s210 = sadd.s32 %s209, 1
      %p213 = scmp.eq.s32.totalorder %s28, 1
      %p214 = scmp.ne.s32.totalorder %s209, %s211
      %p215 = scmp.eq.s32.totalorder %s28, 0
      %p216 = por %p214, %p215
      %p217 = scmp.ne.s32.totalorder %s209, %s211
      %p218 = scmp.eq.s32.totalorder %s33, 1
      %p219 = por %p217, %p218
      %p220 = scmp.ne.s32.totalorder %s211, %s212
      %p221 = scmp.eq.s32.totalorder %s33, 0
      %p222 = por %p220, %p221
      %p223 = scmp.ne.s32.totalorder %s211, %s212
      %p224 = scmp.eq.s32.totalorder %s34, 1
      %p225 = por %p223, %p224
      %p227 = scmp.ne.s32.totalorder %s212, %s226
      %p228 = scmp.eq.s32.totalorder %s34, 0
      %p229 = por %p227, %p228
      %s231 = sadd.s32 %s230, 1
      %p234 = scmp.eq.s32.totalorder %s28, 1
      %p235 = scmp.ne.s32.totalorder %s230, %s232
      %p236 = scmp.eq.s32.totalorder %s28, 0
      %p237 = por %p235, %p236
      %p238 = scmp.ne.s32.totalorder %s230, %s232
      %p239 = scmp.eq.s32.totalorder %s33, 1
      %p240 = por %p238, %p239
      %p241 = scmp.ne.s32.totalorder %s232, %s233
      %p242 = scmp.eq.s32.totalorder %s33, 0
      %p243 = por %p241, %p242
      %p244 = scmp.ne.s32.totalorder %s232, %s233
      %p245 = scmp.eq.s32.totalorder %s34, 1
      %p246 = por %p244, %p245
      %p248 = scmp.ne.s32.totalorder %s233, %s247
      %p249 = scmp.eq.s32.totalorder %s34, 0
      %p250 = por %p248, %p249
      %s252 = sadd.s32 %s251, 1
      %p255 = scmp.eq.s32.totalorder %s28, 1
      %p256 = scmp.ne.s32.totalorder %s251, %s253
      %p257 = scmp.eq.s32.totalorder %s28, 0
      %p258 = por %p256, %p257
      %p259 = scmp.ne.s32.totalorder %s251, %s253
      %p260 = scmp.eq.s32.totalorder %s33, 1
      %p261 = por %p259, %p260
      %p262 = scmp.ne.s32.totalorder %s253, %s254
      %p263 = scmp.eq.s32.totalorder %s33, 0
      %p264 = por %p262, %p263
      %p265 = scmp.ne.s32.totalorder %s253, %s254
      %p266 = scmp.eq.s32.totalorder %s34, 1
      %p267 = por %p265, %p266
      %p269 = scmp.ne.s32.totalorder %s254, %s268
      %p270 = scmp.eq.s32.totalorder %s34, 0
      %p271 = por %p269, %p270
      %s273 = sadd.s32 %s272, 1
      %p276 = scmp.eq.s32.totalorder %s28, 1
      %p277 = scmp.ne.s32.totalorder %s272, %s274
      %p278 = scmp.eq.s32.totalorder %s28, 0
      %p279 = por %p277, %p278
      %p280 = scmp.ne.s32.totalorder %s272, %s274
      %p281 = scmp.eq.s32.totalorder %s33, 1
      %p282 = por %p280, %p281
      %p283 = scmp.ne.s32.totalorder %s274, %s275
      %p284 = scmp.eq.s32.totalorder %s33, 0
      %p285 = por %p283, %p284
      %p286 = scmp.ne.s32.totalorder %s274, %s275
      %p287 = scmp.eq.s32.totalorder %s34, 1
      %p288 = por %p286, %p287
      %p290 = scmp.ne.s32.totalorder %s275, %s289
      %p291 = scmp.eq.s32.totalorder %s34, 0
      %p292 = por %p290, %p291
      %s294 = sadd.s32 %s293, 1
      %p297 = scmp.eq.s32.totalorder %s28, 1
      %p298 = scmp.ne.s32.totalorder %s293, %s295
      %p299 = scmp.eq.s32.totalorder %s28, 0
      %p300 = por %p298, %p299
      %p301 = scmp.ne.s32.totalorder %s293, %s295
      %p302 = scmp.eq.s32.totalorder %s33, 1
      %p303 = por %p301, %p302
      %p304 = scmp.ne.s32.totalorder %s295, %s296
      %p305 = scmp.eq.s32.totalorder %s33, 0
      %p306 = por %p304, %p305
      %p307 = scmp.ne.s32.totalorder %s295, %s296
      %p308 = scmp.eq.s32.totalorder %s34, 1
      %p309 = por %p307, %p308
      %p311 = scmp.ne.s32.totalorder %s296, %s310
      %p312 = scmp.eq.s32.totalorder %s34, 0
      %p313 = por %p311, %p312
      %s315 = sadd.s32 %s314, 1
      %p318 = scmp.eq.s32.totalorder %s28, 1
      %p319 = scmp.ne.s32.totalorder %s314, %s316
      %p320 = scmp.eq.s32.totalorder %s28, 0
      %p321 = por %p319, %p320
      %p322 = scmp.ne.s32.totalorder %s314, %s316
      %p323 = scmp.eq.s32.totalorder %s33, 1
      %p324 = por %p322, %p323
      %p325 = scmp.ne.s32.totalorder %s316, %s317
      %p326 = scmp.eq.s32.totalorder %s33, 0
      %p327 = por %p325, %p326
      %p328 = scmp.ne.s32.totalorder %s316, %s317
      %p329 = scmp.eq.s32.totalorder %s34, 1
      %p330 = por %p328, %p329
      %p332 = scmp.ne.s32.totalorder %s317, %s331
      %p333 = scmp.eq.s32.totalorder %s34, 0
      %p334 = por %p332, %p333
      %s335 = ssub.s32 %s28, %s35
      %p336 = scmp.eq.s32.totalorder %s335, 0
      %s338 = sadd.s32 %s337, 1
      %s339 = scalar_select %p336, %s337, %s338
      %p342 = pneg %p336
      %p343 = scmp.eq.s32.totalorder %s28, 1
      %p344 = por %p342, %p343
      %p345 = scmp.ne.s32.totalorder %s337, %s340
      %p346 = scmp.eq.s32.totalorder %s28, 0
      %p347 = por %p345, %p346
      %p348 = scmp.ne.s32.totalorder %s337, %s340
      %p349 = scmp.eq.s32.totalorder %s33, 1
      %p350 = por %p348, %p349
      %p351 = scmp.ne.s32.totalorder %s340, %s341
      %p352 = scmp.eq.s32.totalorder %s33, 0
      %p353 = por %p351, %p352
      %p354 = scmp.ne.s32.totalorder %s340, %s341
      %p355 = scmp.eq.s32.totalorder %s34, 1
      %p356 = por %p354, %p355
      %p358 = scmp.ne.s32.totalorder %s341, %s357
      %p359 = scmp.eq.s32.totalorder %s34, 0
      %p360 = por %p358, %p359
      %s361 = ssub.s32 %s28, %s35
      %p362 = scmp.eq.s32.totalorder %s361, 0
      %s364 = sadd.s32 %s363, 1
      %s365 = scalar_select %p362, %s363, %s364
      %p368 = pneg %p362
      %p369 = scmp.eq.s32.totalorder %s28, 1
      %p370 = por %p368, %p369
      %p371 = scmp.ne.s32.totalorder %s363, %s366
      %p372 = scmp.eq.s32.totalorder %s28, 0
      %p373 = por %p371, %p372
      %p374 = scmp.ne.s32.totalorder %s363, %s366
      %p375 = scmp.eq.s32.totalorder %s33, 1
      %p376 = por %p374, %p375
      %p377 = scmp.ne.s32.totalorder %s366, %s367
      %p378 = scmp.eq.s32.totalorder %s33, 0
      %p379 = por %p377, %p378
      %p380 = scmp.ne.s32.totalorder %s366, %s367
      %p381 = scmp.eq.s32.totalorder %s34, 1
      %p382 = por %p380, %p381
      %p384 = scmp.ne.s32.totalorder %s367, %s383
      %p385 = scmp.eq.s32.totalorder %s34, 0
      %p386 = por %p384, %p385
      %p387 = scmp.le.s32.totalorder 1, %s28
      %p388 = scmp.lt.s32.totalorder %s28, 3
      %p389 = pnand %p387, %p388
      %p390 = pneg %p389
      // Predicated region
      $region9: #{tpu_custom_call.1} parent=5 // pred_check
        _
      $region10: #{tpu_custom_call.1} parent=5 // pred_check_branch
        %392 = sbr.rel (%p389) target = $region12
      $region11: #{tpu_custom_call.1} parent=5 // pred_region
        %s393 = ssub.s32 %s28, 1
        // Predicated region
        $region13: #{tpu_custom_call.1} parent=11 // pred_check
          %p394 = pneg %p75
        $region14: #{tpu_custom_call.1} parent=11 // pred_check_branch
          %396 = sbr.rel (%p394) target = $region16
        $region15: #{tpu_custom_call.1} parent=11 // pred_region
          _
        $region16: #{tpu_custom_call.1} parent=11 // pred_fallthru
          _
        // Predicated region
        $region17: #{tpu_custom_call.1} parent=11 // pred_check
          %p397 = pneg %p96
        $region18: #{tpu_custom_call.1} parent=11 // pred_check_branch
          %399 = sbr.rel (%p397) target = $region20
        $region19: #{tpu_custom_call.1} parent=11 // pred_region
          _
        $region20: #{tpu_custom_call.1} parent=11 // pred_fallthru
          _
        // Predicated region
        $region21: #{tpu_custom_call.1} parent=11 // pred_check
          %p400 = pneg %p117
        $region22: #{tpu_custom_call.1} parent=11 // pred_check_branch
          %402 = sbr.rel (%p400) target = $region24
        $region23: #{tpu_custom_call.1} parent=11 // pred_region
          _
        $region24: #{tpu_custom_call.1} parent=11 // pred_fallthru
          _
        // Predicated region
        $region25: #{tpu_custom_call.1} parent=11 // pred_check
          %p403 = pneg %p138
        $region26: #{tpu_custom_call.1} parent=11 // pred_check_branch
          %405 = sbr.rel (%p403) target = $region28
        $region27: #{tpu_custom_call.1} parent=11 // pred_region
          _
        $region28: #{tpu_custom_call.1} parent=11 // pred_fallthru
          _
        // Predicated region
        $region29: #{tpu_custom_call.1} parent=11 // pred_check
          %p406 = pneg %p159
        $region30: #{tpu_custom_call.1} parent=11 // pred_check_branch
          %408 = sbr.rel (%p406) target = $region32
        $region31: #{tpu_custom_call.1} parent=11 // pred_region
          _
        $region32: #{tpu_custom_call.1} parent=11 // pred_fallthru
          _
        // Predicated region
        $region33: #{tpu_custom_call.1} parent=11 // pred_check
          %p409 = pneg %p180
        $region34: #{tpu_custom_call.1} parent=11 // pred_check_branch
          %411 = sbr.rel (%p409) target = $region36
        $region35: #{tpu_custom_call.1} parent=11 // pred_region
          _
        $region36: #{tpu_custom_call.1} parent=11 // pred_fallthru
          _
        // Predicated region
        $region37: #{tpu_custom_call.1} parent=11 // pred_check
          %p412 = pneg %p201
        $region38: #{tpu_custom_call.1} parent=11 // pred_check_branch
          %414 = sbr.rel (%p412) target = $region40
        $region39: #{tpu_custom_call.1} parent=11 // pred_region
          _
        $region40: #{tpu_custom_call.1} parent=11 // pred_fallthru
          _
        // Predicated region
        $region41: #{tpu_custom_call.1} parent=11 // pred_check
          %p415 = pneg %p222
        $region42: #{tpu_custom_call.1} parent=11 // pred_check_branch
          %417 = sbr.rel (%p415) target = $region44
        $region43: #{tpu_custom_call.1} parent=11 // pred_region
          _
        $region44: #{tpu_custom_call.1} parent=11 // pred_fallthru
          _
        // Predicated region
        $region45: #{tpu_custom_call.1} parent=11 // pred_check
          %p418 = pneg %p243
        $region46: #{tpu_custom_call.1} parent=11 // pred_check_branch
          %420 = sbr.rel (%p418) target = $region48
        $region47: #{tpu_custom_call.1} parent=11 // pred_region
          _
        $region48: #{tpu_custom_call.1} parent=11 // pred_fallthru
          _
        // Predicated region
        $region49: #{tpu_custom_call.1} parent=11 // pred_check
          %p421 = pneg %p264
        $region50: #{tpu_custom_call.1} parent=11 // pred_check_branch
          %423 = sbr.rel (%p421) target = $region52
        $region51: #{tpu_custom_call.1} parent=11 // pred_region
          _
        $region52: #{tpu_custom_call.1} parent=11 // pred_fallthru
          _
        // Predicated region
        $region53: #{tpu_custom_call.1} parent=11 // pred_check
          %p424 = pneg %p285
        $region54: #{tpu_custom_call.1} parent=11 // pred_check_branch
          %426 = sbr.rel (%p424) target = $region56
        $region55: #{tpu_custom_call.1} parent=11 // pred_region
          _
        $region56: #{tpu_custom_call.1} parent=11 // pred_fallthru
          _
        // Predicated region
        $region57: #{tpu_custom_call.1} parent=11 // pred_check
          %p427 = pneg %p306
        $region58: #{tpu_custom_call.1} parent=11 // pred_check_branch
          %429 = sbr.rel (%p427) target = $region60
        $region59: #{tpu_custom_call.1} parent=11 // pred_region
          _
        $region60: #{tpu_custom_call.1} parent=11 // pred_fallthru
          _
        // Predicated region
        $region61: #{tpu_custom_call.1} parent=11 // pred_check
          %p430 = pneg %p327
        $region62: #{tpu_custom_call.1} parent=11 // pred_check_branch
          %432 = sbr.rel (%p430) target = $region64
        $region63: #{tpu_custom_call.1} parent=11 // pred_region
          _
        $region64: #{tpu_custom_call.1} parent=11 // pred_fallthru
          _
      $region12: #{tpu_custom_call.1} parent=5 // pred_fallthru
        _
      %p433 = scmp.lt.s32.totalorder %s28, 2
      // Predicated region
      $region65: #{tpu_custom_call.1} parent=5 // pred_check
        %p434 = pneg %p433
      $region66: #{tpu_custom_call.1} parent=5 // pred_check_branch
        %436 = sbr.rel (%p434) target = $region68
      $region67: #{tpu_custom_call.1} parent=5 // pred_region
        // Predicated region
        $region69: #{tpu_custom_call.1} parent=67 // pred_check
          %p437 = pneg %p48
        $region70: #{tpu_custom_call.1} parent=67 // pred_check_branch
          %439 = sbr.rel (%p437) target = $region72
        $region71: #{tpu_custom_call.1} parent=67 // pred_region
          %p440 = scmp.lt.s32.totalorder %s28, 1
          %s441 = scalar_select %p440, %s28, 1
          %s442 = smul.addr %s441, 36
          %s443 = smul.addr %s442, 4
          %s444 = scalar_lea.vmem %s0, %s443
        $region72: #{tpu_custom_call.1} parent=67 // pred_fallthru
          _
      $region68: #{tpu_custom_call.1} parent=5 // pred_fallthru
        _
      %p445 = scmp.le.s32.totalorder 1, %s28
      %p446 = scmp.lt.s32.totalorder %s28, 3
      %p447 = pnand %p445, %p446
      %p448 = pneg %p447
      // Predicated region
      $region73: #{tpu_custom_call.1} parent=5 // pred_check
        _
      $region74: #{tpu_custom_call.1} parent=5 // pred_check_branch
        %450 = sbr.rel (%p447) target = $region76
      $region75: #{tpu_custom_call.1} parent=5 // pred_region
        %s451 = ssub.s32 %s28, 1
        %p452 = scmp.lt.s32.totalorder %s33, 1
        %s453 = scalar_select %p452, %s33, 1
        %s454 = smul.addr %s453, 36
        %s455 = smul.addr %s454, 4
        %s456 = scalar_lea.vmem %s0, %s455
        %p457 = pneg %p54
        %p458 = pneg %p51
        %p459 = pneg %p75
        %p460 = pneg %p72
        %p461 = pneg %p96
        %p462 = pneg %p93
        %p463 = pneg %p117
        %p464 = pneg %p114
        %p465 = pneg %p138
        %p466 = pneg %p135
        %p467 = pneg %p159
        %p468 = pneg %p156
        %p469 = pneg %p180
        %p470 = pneg %p177
        %p471 = pneg %p201
        %p472 = pneg %p198
        %p473 = pneg %p222
        %p474 = pneg %p219
        %p475 = pneg %p243
        %p476 = pneg %p240
        %p477 = pneg %p264
        %p478 = pneg %p261
        %p479 = pneg %p285
        %p480 = pneg %p282
        %p481 = pneg %p306
        %p482 = pneg %p303
        %p483 = pneg %p327
        %p484 = pneg %p324
        %p485 = pneg %p353
        %p486 = pneg %p350
        %s487 = sand.u32 %s340, 1
        %s488 = scalar_lea.sflag [#allocation3], %s487
        %s489 = sand.u32 %s340, 1
        %s490 = scalar_lea.vmem [#allocation2], %s489
        %p491 = pneg %p379
        %p492 = pneg %p376
        %s493 = sand.u32 %s366, 1
        %s494 = scalar_lea.sflag [#allocation5], %s493
        %s495 = sand.u32 %s366, 1
        %s496 = scalar_lea.vmem [#allocation4], %s495
        %p497 = scmp.lt.s32.totalorder %s33, 1
        %s498 = scalar_select %p497, %s33, 1
        %s499 = smul.addr %s498, 36
        %s500 = smul.addr %s499, 4
        %s501 = scalar_lea.vmem %s0, %s500
        %v503 = vld [vmem:[%s1] sm:$0xf]
        %v504 = vld [vmem:[%s1 + $0x4] sm:$0x3]
        %v505 = vld [vmem:[%s2] sm:$0xf]
        %v506 = vld [vmem:[%s2 + $0x4] sm:$0x3]
        %v507 = vld [vmem:[%s3] sm:$0xf]
        %v508 = vld [vmem:[%s3 + $0x4] sm:$0x3]
        %v509 = vld [vmem:[%s4] sm:$0x1]
        %v510 = vld [vmem:[%s501] sm:$0xf]
        %v511 = vld [vmem:[%s501 + $0x4] sm:$0xf]
        %v512 = vld [vmem:[%s501 + $0x8] sm:$0xf]
        %v513 = vld [vmem:[%s501 + $0xc] sm:$0xf]
        %v514 = vld [vmem:[%s501 + $0x10] sm:$0xf]
        %v515 = vld [vmem:[%s501 + $0x14] sm:$0xf]
        %v516 = vld [vmem:[%s501 + $0x18] sm:$0xf]
        %v517 = vld [vmem:[%s501 + $0x1c] sm:$0xf]
        %v518 = vld [vmem:[%s501 + $0x20] sm:$0xf]
        %v519 = vld [vmem:[%s501 + $0x24] sm:$0xf]
        %v520 = vld [vmem:[%s501 + $0x28] sm:$0xf]
        %v521 = vld [vmem:[%s501 + $0x2c] sm:$0xf]
        %v522 = vld [vmem:[%s501 + $0x30] sm:$0xf]
        %v523 = vld [vmem:[%s501 + $0x34] sm:$0xf]
        %v524 = vld [vmem:[%s501 + $0x38] sm:$0xf]
        %v525 = vld [vmem:[%s501 + $0x3c] sm:$0xf]
        %v526 = vld [vmem:[%s501 + $0x40] sm:$0xf]
        %v527 = vld [vmem:[%s501 + $0x44] sm:$0xf]
        %v528 = vld [vmem:[%s501 + $0x48] sm:$0xf]
        %v529 = vld [vmem:[%s501 + $0x4c] sm:$0xf]
        %v530 = vld [vmem:[%s501 + $0x50] sm:$0xf]
        %v531 = vld [vmem:[%s501 + $0x54] sm:$0xf]
        %v532 = vld [vmem:[%s501 + $0x58] sm:$0xf]
        %v533 = vld [vmem:[%s501 + $0x5c] sm:$0xf]
        %v534 = vld [vmem:[%s501 + $0x60] sm:$0xf]
        %v535 = vld [vmem:[%s501 + $0x64] sm:$0xf]
        %v536 = vld [vmem:[%s501 + $0x68] sm:$0xf]
        %v537 = vld [vmem:[%s501 + $0x6c] sm:$0xf]
        %v538 = vld [vmem:[%s501 + $0x70] sm:$0xf]
        %v539 = vld [vmem:[%s501 + $0x74] sm:$0xf]
        %v540 = vld [vmem:[%s501 + $0x78] sm:$0xf]
        %v541 = vld [vmem:[%s501 + $0x7c] sm:$0xf]
        %s542 = scalar_lea.vmem %s501, 8
        %v543 = vld [vmem:[%s542] sm:$0xf]
        %v544 = vld [vmem:[%s542 + $0x4] sm:$0xf]
        %v545 = vld [vmem:[%s542 + $0x8] sm:$0xf]
        %v546 = vld [vmem:[%s542 + $0xc] sm:$0xf]
        %v547 = vld [vmem:[%s542 + $0x10] sm:$0xf]
        %v548 = vld [vmem:[%s542 + $0x14] sm:$0xf]
        %v549 = vld [vmem:[%s542 + $0x18] sm:$0xf]
        %v550 = vld [vmem:[%s542 + $0x1c] sm:$0xf]
        %v551 = vld [vmem:[%s542 + $0x20] sm:$0xf]
        %v552 = vld [vmem:[%s542 + $0x24] sm:$0xf]
        %v553 = vld [vmem:[%s542 + $0x28] sm:$0xf]
        %v554 = vld [vmem:[%s542 + $0x2c] sm:$0xf]
        %v555 = vld [vmem:[%s542 + $0x30] sm:$0xf]
        %v556 = vld [vmem:[%s542 + $0x34] sm:$0xf]
        %v557 = vld [vmem:[%s542 + $0x38] sm:$0xf]
        %v558 = vld [vmem:[%s542 + $0x3c] sm:$0xf]
        %v559 = vld [vmem:[%s542 + $0x40] sm:$0xf]
        %v560 = vld [vmem:[%s542 + $0x44] sm:$0xf]
        %v561 = vld [vmem:[%s542 + $0x48] sm:$0xf]
        %v562 = vld [vmem:[%s542 + $0x4c] sm:$0xf]
        %v563 = vld [vmem:[%s542 + $0x50] sm:$0xf]
        %v564 = vld [vmem:[%s542 + $0x54] sm:$0xf]
        %v565 = vld [vmem:[%s542 + $0x58] sm:$0xf]
        %v566 = vld [vmem:[%s542 + $0x5c] sm:$0xf]
        %v567 = vld [vmem:[%s542 + $0x60] sm:$0xf]
        %v568 = vld [vmem:[%s542 + $0x64] sm:$0xf]
        %v569 = vld [vmem:[%s542 + $0x68] sm:$0xf]
        %v570 = vld [vmem:[%s542 + $0x6c] sm:$0xf]
        %v571 = vld [vmem:[%s542 + $0x70] sm:$0xf]
        %v572 = vld [vmem:[%s542 + $0x74] sm:$0xf]
        %v573 = vld [vmem:[%s542 + $0x78] sm:$0xf]
        %v574 = vld [vmem:[%s542 + $0x7c] sm:$0xf]
        %v607 = vunpack.c.l.b16 %v543
        %v608 = vunpack.c.l.b16 %v544
        %v609 = vunpack.c.l.b16 %v545
        %v610 = vunpack.c.l.b16 %v546
        %v611 = vunpack.c.l.b16 %v547
        %v612 = vunpack.c.l.b16 %v548
        %v613 = vunpack.c.l.b16 %v549
        %v614 = vunpack.c.l.b16 %v550
        %v615 = vunpack.c.l.b16 %v551
        %v616 = vunpack.c.l.b16 %v552
        %v617 = vunpack.c.l.b16 %v553
        %v618 = vunpack.c.l.b16 %v554
        %v619 = vunpack.c.l.b16 %v555
        %v620 = vunpack.c.l.b16 %v556
        %v621 = vunpack.c.l.b16 %v557
        %v622 = vunpack.c.l.b16 %v558
        %v623 = vunpack.c.l.b16 %v559
        %v624 = vunpack.c.l.b16 %v560
        %v625 = vunpack.c.l.b16 %v561
        %v626 = vunpack.c.l.b16 %v562
        %v627 = vunpack.c.l.b16 %v563
        %v628 = vunpack.c.l.b16 %v564
        %v629 = vunpack.c.l.b16 %v565
        %v630 = vunpack.c.l.b16 %v566
        %v631 = vunpack.c.l.b16 %v567
        %v632 = vunpack.c.l.b16 %v568
        %v633 = vunpack.c.l.b16 %v569
        %v634 = vunpack.c.l.b16 %v570
        %v635 = vunpack.c.l.b16 %v571
        %v636 = vunpack.c.l.b16 %v572
        %v637 = vunpack.c.l.b16 %v573
        %v638 = vunpack.c.l.b16 %v574
        %v639 = vpack.c.b16 %v608, %v607
        %v640 = vpack.c.b16 %v610, %v609
        %v641 = vpack.c.b16 %v612, %v611
        %v642 = vpack.c.b16 %v614, %v613
        %v643 = vpack.c.b16 %v616, %v615
        %v644 = vpack.c.b16 %v618, %v617
        %v645 = vpack.c.b16 %v620, %v619
        %v646 = vpack.c.b16 %v622, %v621
        %v647 = vpack.c.b16 %v624, %v623
        %v648 = vpack.c.b16 %v626, %v625
        %v649 = vpack.c.b16 %v628, %v627
        %v650 = vpack.c.b16 %v630, %v629
        %v651 = vpack.c.b16 %v632, %v631
        %v652 = vpack.c.b16 %v634, %v633
        %v653 = vpack.c.b16 %v636, %v635
        %v654 = vpack.c.b16 %v638, %v637
        %v657 = vunpack.c.l.b16 %v505
        %v658 = vunpack.c.l.b16 %v506
        %v659 = vpack.c.b16 %v658, %v657
        %vm660 = vcmask 97280
        %v662 = vsel %vm660, %v639, 0
        %v665 = vsel %vm660, %v640, 0
        %v668 = vsel %vm660, %v641, 0
        %v671 = vsel %vm660, %v642, 0
        %v674 = vsel %vm660, %v643, 0
        %v677 = vsel %vm660, %v644, 0
        %v680 = vsel %vm660, %v645, 0
        %v683 = vsel %vm660, %v646, 0
        %v686 = vsel %vm660, %v647, 0
        %v689 = vsel %vm660, %v648, 0
        %v692 = vsel %vm660, %v649, 0
        %v695 = vsel %vm660, %v650, 0
        %v698 = vsel %vm660, %v651, 0
        %v701 = vsel %vm660, %v652, 0
        %v704 = vsel %vm660, %v653, 0
        %v707 = vsel %vm660, %v654, 0
        %vm709 = vcmask 1045504
        %v711 = vsel %vm709, %v659, 0
        %713 = vmatprep.subr.bf16.mxu0 0
        %714 = vmatpush1.bf16.msra.mxu0 0
        %715 = vmatprep.subr.bf16.mxu0 0
        %716 = vmatpush1.bf16.msra.mxu0 0
        %717 = vmatprep.subr.bf16.mxu0 0
        %718 = vmatpush1.bf16.msra.mxu0 0
        %719 = vmatprep.subr.bf16.mxu0 0
        %720 = vmatpush1.bf16.msra.mxu0 0
        %721 = vmatprep.subr.bf16.mxu0 0
        %722 = vmatpush1.bf16.msra.mxu0 0
        %723 = vmatprep.subr.bf16.mxu0 0
        %724 = vmatpush1.bf16.msra.mxu0 0
        %725 = vmatprep.subr.bf16.mxu0 0
        %726 = vmatpush1.bf16.msra.mxu0 0
        %727 = vmatprep.subr.bf16.mxu0 0
        %728 = vmatpush1.bf16.msra.mxu0 %v711
        %729 = vmatprep.subr.bf16.mxu0 0
        %730 = vmatpush2.bf16.msra.mxu0 0
        %731 = vmatprep.subr.bf16.mxu0 0
        %732 = vmatpush2.bf16.msra.mxu0 0
        %733 = vmatprep.subr.bf16.mxu0 0
        %734 = vmatpush2.bf16.msra.mxu0 0
        %735 = vmatprep.subr.bf16.mxu0 0
        %736 = vmatpush2.bf16.msra.mxu0 0
        %737 = vmatprep.subr.bf16.mxu0 0
        %738 = vmatpush2.bf16.msra.mxu0 0
        %739 = vmatprep.subr.bf16.mxu0 0
        %740 = vmatpush2.bf16.msra.mxu0 0
        %741 = vmatprep.subr.bf16.mxu0 0
        %742 = vmatpush2.bf16.msra.mxu0 0
        %743 = vmatprep.subr.bf16.mxu0 0
        %744 = vmatpush2.bf16.msra.mxu0 0
        %745 = vmatprep.mubr.bf16.mxu0 0
        %746 = vmatmul.mubr.bf16.gmra.mxu0 %v662
        %v747 = vpop.f32.mrf.mxu0
        %v748 = vadd.f32 0.0, %v747
        %v749 = vpop.f32.mrf.mxu0
        %v750 = vpop.f32.mrf.mxu0
        %v751 = vadd.f32 0.0, %v750
        %v752 = vpop.f32.mrf.mxu0
        %753 = vmatprep.mubr.bf16.mxu0 0
        %754 = vmatmul.mubr.bf16.gmra.mxu0 %v665
        %v755 = vpop.f32.mrf.mxu0
        %v756 = vadd.f32 0.0, %v755
        %v757 = vpop.f32.mrf.mxu0
        %v758 = vpop.f32.mrf.mxu0
        %v759 = vadd.f32 0.0, %v758
        %v760 = vpop.f32.mrf.mxu0
        %761 = vmatprep.mubr.bf16.mxu0 0
        %762 = vmatmul.mubr.bf16.gmra.mxu0 %v668
        %v763 = vpop.f32.mrf.mxu0
        %v764 = vadd.f32 0.0, %v763
        %v765 = vpop.f32.mrf.mxu0
        %v766 = vpop.f32.mrf.mxu0
        %v767 = vadd.f32 0.0, %v766
        %v768 = vpop.f32.mrf.mxu0
        %769 = vmatprep.mubr.bf16.mxu0 0
        %770 = vmatmul.mubr.bf16.gmra.mxu0 %v671
        %v771 = vpop.f32.mrf.mxu0
        %v772 = vadd.f32 0.0, %v771
        %v773 = vpop.f32.mrf.mxu0
        %v774 = vpop.f32.mrf.mxu0
        %v775 = vadd.f32 0.0, %v774
        %v776 = vpop.f32.mrf.mxu0
        %777 = vmatprep.mubr.bf16.mxu0 0
        %778 = vmatmul.mubr.bf16.gmra.mxu0 %v674
        %v779 = vpop.f32.mrf.mxu0
        %v780 = vadd.f32 0.0, %v779
        %v781 = vpop.f32.mrf.mxu0
        %v782 = vpop.f32.mrf.mxu0
        %v783 = vadd.f32 0.0, %v782
        %v784 = vpop.f32.mrf.mxu0
        %785 = vmatprep.mubr.bf16.mxu0 0
        %786 = vmatmul.mubr.bf16.gmra.mxu0 %v677
        %v787 = vpop.f32.mrf.mxu0
        %v788 = vadd.f32 0.0, %v787
        %v789 = vpop.f32.mrf.mxu0
        %v790 = vpop.f32.mrf.mxu0
        %v791 = vadd.f32 0.0, %v790
        %v792 = vpop.f32.mrf.mxu0
        %793 = vmatprep.mubr.bf16.mxu0 0
        %794 = vmatmul.mubr.bf16.gmra.mxu0 %v680
        %v795 = vpop.f32.mrf.mxu0
        %v796 = vadd.f32 0.0, %v795
        %v797 = vpop.f32.mrf.mxu0
        %v798 = vpop.f32.mrf.mxu0
        %v799 = vadd.f32 0.0, %v798
        %v800 = vpop.f32.mrf.mxu0
        %801 = vmatprep.mubr.bf16.mxu0 0
        %802 = vmatmul.mubr.bf16.gmra.mxu0 %v683
        %v803 = vpop.f32.mrf.mxu0
        %v804 = vadd.f32 0.0, %v803
        %v805 = vpop.f32.mrf.mxu0
        %v806 = vpop.f32.mrf.mxu0
        %v807 = vadd.f32 0.0, %v806
        %v808 = vpop.f32.mrf.mxu0
        %809 = vmatprep.mubr.bf16.mxu0 0
        %810 = vmatmul.mubr.bf16.gmra.mxu0 %v686
        %v811 = vpop.f32.mrf.mxu0
        %v812 = vadd.f32 0.0, %v811
        %v813 = vpop.f32.mrf.mxu0
        %v814 = vpop.f32.mrf.mxu0
        %v815 = vadd.f32 0.0, %v814
        %v816 = vpop.f32.mrf.mxu0
        %817 = vmatprep.mubr.bf16.mxu0 0
        %818 = vmatmul.mubr.bf16.gmra.mxu0 %v689
        %v819 = vpop.f32.mrf.mxu0
        %v820 = vadd.f32 0.0, %v819
        %v821 = vpop.f32.mrf.mxu0
        %v822 = vpop.f32.mrf.mxu0
        %v823 = vadd.f32 0.0, %v822
        %v824 = vpop.f32.mrf.mxu0
        %825 = vmatprep.mubr.bf16.mxu0 0
        %826 = vmatmul.mubr.bf16.gmra.mxu0 %v692
        %v827 = vpop.f32.mrf.mxu0
        %v828 = vadd.f32 0.0, %v827
        %v829 = vpop.f32.mrf.mxu0
        %v830 = vpop.f32.mrf.mxu0
        %v831 = vadd.f32 0.0, %v830
        %v832 = vpop.f32.mrf.mxu0
        %833 = vmatprep.mubr.bf16.mxu0 0
        %834 = vmatmul.mubr.bf16.gmra.mxu0 %v695
        %v835 = vpop.f32.mrf.mxu0
        %v836 = vadd.f32 0.0, %v835
        %v837 = vpop.f32.mrf.mxu0
        %v838 = vpop.f32.mrf.mxu0
        %v839 = vadd.f32 0.0, %v838
        %v840 = vpop.f32.mrf.mxu0
        %841 = vmatprep.mubr.bf16.mxu0 0
        %842 = vmatmul.mubr.bf16.gmra.mxu0 %v698
        %v843 = vpop.f32.mrf.mxu0
        %v844 = vadd.f32 0.0, %v843
        %v845 = vpop.f32.mrf.mxu0
        %v846 = vpop.f32.mrf.mxu0
        %v847 = vadd.f32 0.0, %v846
        %v848 = vpop.f32.mrf.mxu0
        %849 = vmatprep.mubr.bf16.mxu0 0
        %850 = vmatmul.mubr.bf16.gmra.mxu0 %v701
        %v851 = vpop.f32.mrf.mxu0
        %v852 = vadd.f32 0.0, %v851
        %v853 = vpop.f32.mrf.mxu0
        %v854 = vpop.f32.mrf.mxu0
        %v855 = vadd.f32 0.0, %v854
        %v856 = vpop.f32.mrf.mxu0
        %857 = vmatprep.mubr.bf16.mxu0 0
        %858 = vmatmul.mubr.bf16.gmra.mxu0 %v704
        %v859 = vpop.f32.mrf.mxu0
        %v860 = vadd.f32 0.0, %v859
        %v861 = vpop.f32.mrf.mxu0
        %v862 = vpop.f32.mrf.mxu0
        %v863 = vadd.f32 0.0, %v862
        %v864 = vpop.f32.mrf.mxu0
        %865 = vmatprep.mubr.bf16.mxu0 0
        %866 = vmatmul.mubr.bf16.gmra.mxu0 %v707
        %v867 = vpop.f32.mrf.mxu0
        %v868 = vadd.f32 0.0, %v867
        %v869 = vpop.f32.mrf.mxu0
        %v870 = vpop.f32.mrf.mxu0
        %v871 = vadd.f32 0.0, %v870
        %v872 = vpop.f32.mrf.mxu0
        %873 = vdwg.mxu0
        %v906 = vunpack.c.l.b16 %v510
        %v907 = vunpack.c.l.b16 %v511
        %v908 = vunpack.c.l.b16 %v512
        %v909 = vunpack.c.l.b16 %v513
        %v910 = vunpack.c.l.b16 %v514
        %v911 = vunpack.c.l.b16 %v515
        %v912 = vunpack.c.l.b16 %v516
        %v913 = vunpack.c.l.b16 %v517
        %v914 = vunpack.c.l.b16 %v518
        %v915 = vunpack.c.l.b16 %v519
        %v916 = vunpack.c.l.b16 %v520
        %v917 = vunpack.c.l.b16 %v521
        %v918 = vunpack.c.l.b16 %v522
        %v919 = vunpack.c.l.b16 %v523
        %v920 = vunpack.c.l.b16 %v524
        %v921 = vunpack.c.l.b16 %v525
        %v922 = vunpack.c.l.b16 %v526
        %v923 = vunpack.c.l.b16 %v527
        %v924 = vunpack.c.l.b16 %v528
        %v925 = vunpack.c.l.b16 %v529
        %v926 = vunpack.c.l.b16 %v530
        %v927 = vunpack.c.l.b16 %v531
        %v928 = vunpack.c.l.b16 %v532
        %v929 = vunpack.c.l.b16 %v533
        %v930 = vunpack.c.l.b16 %v534
        %v931 = vunpack.c.l.b16 %v535
        %v932 = vunpack.c.l.b16 %v536
        %v933 = vunpack.c.l.b16 %v537
        %v934 = vunpack.c.l.b16 %v538
        %v935 = vunpack.c.l.b16 %v539
        %v936 = vunpack.c.l.b16 %v540
        %v937 = vunpack.c.l.b16 %v541
        %v938 = vpack.c.b16 %v907, %v906
        %v939 = vpack.c.b16 %v909, %v908
        %v940 = vpack.c.b16 %v911, %v910
        %v941 = vpack.c.b16 %v913, %v912
        %v942 = vpack.c.b16 %v915, %v914
        %v943 = vpack.c.b16 %v917, %v916
        %v944 = vpack.c.b16 %v919, %v918
        %v945 = vpack.c.b16 %v921, %v920
        %v946 = vpack.c.b16 %v923, %v922
        %v947 = vpack.c.b16 %v925, %v924
        %v948 = vpack.c.b16 %v927, %v926
        %v949 = vpack.c.b16 %v929, %v928
        %v950 = vpack.c.b16 %v931, %v930
        %v951 = vpack.c.b16 %v933, %v932
        %v952 = vpack.c.b16 %v935, %v934
        %v953 = vpack.c.b16 %v937, %v936
        %v956 = vunpack.c.l.b16 %v503
        %v957 = vunpack.c.l.b16 %v504
        %v958 = vpack.c.b16 %v957, %v956
        %v960 = vsel %vm660, %v938, 0
        %v963 = vsel %vm660, %v939, 0
        %v966 = vsel %vm660, %v940, 0
        %v969 = vsel %vm660, %v941, 0
        %v972 = vsel %vm660, %v942, 0
        %v975 = vsel %vm660, %v943, 0
        %v978 = vsel %vm660, %v944, 0
        %v981 = vsel %vm660, %v945, 0
        %v984 = vsel %vm660, %v946, 0
        %v987 = vsel %vm660, %v947, 0
        %v990 = vsel %vm660, %v948, 0
        %v993 = vsel %vm660, %v949, 0
        %v996 = vsel %vm660, %v950, 0
        %v999 = vsel %vm660, %v951, 0
        %v1002 = vsel %vm660, %v952, 0
        %v1005 = vsel %vm660, %v953, 0
        %v1008 = vsel %vm709, %v958, 0
        %1010 = vmatprep.subr.bf16.mxu0 0
        %1011 = vmatpush1.bf16.msra.mxu0 0
        %1012 = vmatprep.subr.bf16.mxu0 0
        %1013 = vmatpush1.bf16.msra.mxu0 0
        %1014 = vmatprep.subr.bf16.mxu0 0
        %1015 = vmatpush1.bf16.msra.mxu0 0
        %1016 = vmatprep.subr.bf16.mxu0 0
        %1017 = vmatpush1.bf16.msra.mxu0 0
        %1018 = vmatprep.subr.bf16.mxu0 0
        %1019 = vmatpush1.bf16.msra.mxu0 0
        %1020 = vmatprep.subr.bf16.mxu0 0
        %1021 = vmatpush1.bf16.msra.mxu0 0
        %1022 = vmatprep.subr.bf16.mxu0 0
        %1023 = vmatpush1.bf16.msra.mxu0 0
        %1024 = vmatprep.subr.bf16.mxu0 0
        %1025 = vmatpush1.bf16.msra.mxu0 %v1008
        %1026 = vmatprep.subr.bf16.mxu0 0
        %1027 = vmatpush2.bf16.msra.mxu0 0
        %1028 = vmatprep.subr.bf16.mxu0 0
        %1029 = vmatpush2.bf16.msra.mxu0 0
        %1030 = vmatprep.subr.bf16.mxu0 0
        %1031 = vmatpush2.bf16.msra.mxu0 0
        %1032 = vmatprep.subr.bf16.mxu0 0
        %1033 = vmatpush2.bf16.msra.mxu0 0
        %1034 = vmatprep.subr.bf16.mxu0 0
        %1035 = vmatpush2.bf16.msra.mxu0 0
        %1036 = vmatprep.subr.bf16.mxu0 0
        %1037 = vmatpush2.bf16.msra.mxu0 0
        %1038 = vmatprep.subr.bf16.mxu0 0
        %1039 = vmatpush2.bf16.msra.mxu0 0
        %1040 = vmatprep.subr.bf16.mxu0 0
        %1041 = vmatpush2.bf16.msra.mxu0 0
        %1042 = vmatprep.mubr.bf16.mxu0 0
        %1043 = vmatmul.mubr.bf16.gmra.mxu0 %v960
        %v1044 = vpop.f32.mrf.mxu0
        %v1045 = vadd.f32 %v748, %v1044
        %v1046 = vpop.f32.mrf.mxu0
        %v1047 = vpop.f32.mrf.mxu0
        %v1048 = vadd.f32 %v751, %v1047
        %v1049 = vpop.f32.mrf.mxu0
        %1050 = vmatprep.mubr.bf16.mxu0 0
        %1051 = vmatmul.mubr.bf16.gmra.mxu0 %v963
        %v1052 = vpop.f32.mrf.mxu0
        %v1053 = vadd.f32 %v756, %v1052
        %v1054 = vpop.f32.mrf.mxu0
        %v1055 = vpop.f32.mrf.mxu0
        %v1056 = vadd.f32 %v759, %v1055
        %v1057 = vpop.f32.mrf.mxu0
        %1058 = vmatprep.mubr.bf16.mxu0 0
        %1059 = vmatmul.mubr.bf16.gmra.mxu0 %v966
        %v1060 = vpop.f32.mrf.mxu0
        %v1061 = vadd.f32 %v764, %v1060
        %v1062 = vpop.f32.mrf.mxu0
        %v1063 = vpop.f32.mrf.mxu0
        %v1064 = vadd.f32 %v767, %v1063
        %v1065 = vpop.f32.mrf.mxu0
        %1066 = vmatprep.mubr.bf16.mxu0 0
        %1067 = vmatmul.mubr.bf16.gmra.mxu0 %v969
        %v1068 = vpop.f32.mrf.mxu0
        %v1069 = vadd.f32 %v772, %v1068
        %v1070 = vpop.f32.mrf.mxu0
        %v1071 = vpop.f32.mrf.mxu0
        %v1072 = vadd.f32 %v775, %v1071
        %v1073 = vpop.f32.mrf.mxu0
        %1074 = vmatprep.mubr.bf16.mxu0 0
        %1075 = vmatmul.mubr.bf16.gmra.mxu0 %v972
        %v1076 = vpop.f32.mrf.mxu0
        %v1077 = vadd.f32 %v780, %v1076
        %v1078 = vpop.f32.mrf.mxu0
        %v1079 = vpop.f32.mrf.mxu0
        %v1080 = vadd.f32 %v783, %v1079
        %v1081 = vpop.f32.mrf.mxu0
        %1082 = vmatprep.mubr.bf16.mxu0 0
        %1083 = vmatmul.mubr.bf16.gmra.mxu0 %v975
        %v1084 = vpop.f32.mrf.mxu0
        %v1085 = vadd.f32 %v788, %v1084
        %v1086 = vpop.f32.mrf.mxu0
        %v1087 = vpop.f32.mrf.mxu0
        %v1088 = vadd.f32 %v791, %v1087
        %v1089 = vpop.f32.mrf.mxu0
        %1090 = vmatprep.mubr.bf16.mxu0 0
        %1091 = vmatmul.mubr.bf16.gmra.mxu0 %v978
        %v1092 = vpop.f32.mrf.mxu0
        %v1093 = vadd.f32 %v796, %v1092
        %v1094 = vpop.f32.mrf.mxu0
        %v1095 = vpop.f32.mrf.mxu0
        %v1096 = vadd.f32 %v799, %v1095
        %v1097 = vpop.f32.mrf.mxu0
        %1098 = vmatprep.mubr.bf16.mxu0 0
        %1099 = vmatmul.mubr.bf16.gmra.mxu0 %v981
        %v1100 = vpop.f32.mrf.mxu0
        %v1101 = vadd.f32 %v804, %v1100
        %v1102 = vpop.f32.mrf.mxu0
        %v1103 = vpop.f32.mrf.mxu0
        %v1104 = vadd.f32 %v807, %v1103
        %v1105 = vpop.f32.mrf.mxu0
        %1106 = vmatprep.mubr.bf16.mxu0 0
        %1107 = vmatmul.mubr.bf16.gmra.mxu0 %v984
        %v1108 = vpop.f32.mrf.mxu0
        %v1109 = vadd.f32 %v812, %v1108
        %v1110 = vpop.f32.mrf.mxu0
        %v1111 = vpop.f32.mrf.mxu0
        %v1112 = vadd.f32 %v815, %v1111
        %v1113 = vpop.f32.mrf.mxu0
        %1114 = vmatprep.mubr.bf16.mxu0 0
        %1115 = vmatmul.mubr.bf16.gmra.mxu0 %v987
        %v1116 = vpop.f32.mrf.mxu0
        %v1117 = vadd.f32 %v820, %v1116
        %v1118 = vpop.f32.mrf.mxu0
        %v1119 = vpop.f32.mrf.mxu0
        %v1120 = vadd.f32 %v823, %v1119
        %v1121 = vpop.f32.mrf.mxu0
        %1122 = vmatprep.mubr.bf16.mxu0 0
        %1123 = vmatmul.mubr.bf16.gmra.mxu0 %v990
        %v1124 = vpop.f32.mrf.mxu0
        %v1125 = vadd.f32 %v828, %v1124
        %v1126 = vpop.f32.mrf.mxu0
        %v1127 = vpop.f32.mrf.mxu0
        %v1128 = vadd.f32 %v831, %v1127
        %v1129 = vpop.f32.mrf.mxu0
        %1130 = vmatprep.mubr.bf16.mxu0 0
        %1131 = vmatmul.mubr.bf16.gmra.mxu0 %v993
        %v1132 = vpop.f32.mrf.mxu0
        %v1133 = vadd.f32 %v836, %v1132
        %v1134 = vpop.f32.mrf.mxu0
        %v1135 = vpop.f32.mrf.mxu0
        %v1136 = vadd.f32 %v839, %v1135
        %v1137 = vpop.f32.mrf.mxu0
        %1138 = vmatprep.mubr.bf16.mxu0 0
        %1139 = vmatmul.mubr.bf16.gmra.mxu0 %v996
        %v1140 = vpop.f32.mrf.mxu0
        %v1141 = vadd.f32 %v844, %v1140
        %v1142 = vpop.f32.mrf.mxu0
        %v1143 = vpop.f32.mrf.mxu0
        %v1144 = vadd.f32 %v847, %v1143
        %v1145 = vpop.f32.mrf.mxu0
        %1146 = vmatprep.mubr.bf16.mxu0 0
        %1147 = vmatmul.mubr.bf16.gmra.mxu0 %v999
        %v1148 = vpop.f32.mrf.mxu0
        %v1149 = vadd.f32 %v852, %v1148
        %v1150 = vpop.f32.mrf.mxu0
        %v1151 = vpop.f32.mrf.mxu0
        %v1152 = vadd.f32 %v855, %v1151
        %v1153 = vpop.f32.mrf.mxu0
        %1154 = vmatprep.mubr.bf16.mxu0 0
        %1155 = vmatmul.mubr.bf16.gmra.mxu0 %v1002
        %v1156 = vpop.f32.mrf.mxu0
        %v1157 = vadd.f32 %v860, %v1156
        %v1158 = vpop.f32.mrf.mxu0
        %v1159 = vpop.f32.mrf.mxu0
        %v1160 = vadd.f32 %v863, %v1159
        %v1161 = vpop.f32.mrf.mxu0
        %1162 = vmatprep.mubr.bf16.mxu0 0
        %1163 = vmatmul.mubr.bf16.gmra.mxu0 %v1005
        %v1164 = vpop.f32.mrf.mxu0
        %v1165 = vadd.f32 %v868, %v1164
        %v1166 = vpop.f32.mrf.mxu0
        %v1167 = vpop.f32.mrf.mxu0
        %v1168 = vadd.f32 %v871, %v1167
        %v1169 = vpop.f32.mrf.mxu0
        %1170 = vdwg.mxu0
        %s1171 = scalar_lea.vmem %s501, 16
        %v1172 = vld [vmem:[%s1171] sm:$0xf]
        %v1173 = vld [vmem:[%s1171 + $0x4] sm:$0xf]
        %v1174 = vld [vmem:[%s1171 + $0x8] sm:$0xf]
        %v1175 = vld [vmem:[%s1171 + $0xc] sm:$0xf]
        %v1176 = vld [vmem:[%s1171 + $0x10] sm:$0xf]
        %v1177 = vld [vmem:[%s1171 + $0x14] sm:$0xf]
        %v1178 = vld [vmem:[%s1171 + $0x18] sm:$0xf]
        %v1179 = vld [vmem:[%s1171 + $0x1c] sm:$0xf]
        %v1180 = vld [vmem:[%s1171 + $0x20] sm:$0xf]
        %v1181 = vld [vmem:[%s1171 + $0x24] sm:$0xf]
        %v1182 = vld [vmem:[%s1171 + $0x28] sm:$0xf]
        %v1183 = vld [vmem:[%s1171 + $0x2c] sm:$0xf]
        %v1184 = vld [vmem:[%s1171 + $0x30] sm:$0xf]
        %v1185 = vld [vmem:[%s1171 + $0x34] sm:$0xf]
        %v1186 = vld [vmem:[%s1171 + $0x38] sm:$0xf]
        %v1187 = vld [vmem:[%s1171 + $0x3c] sm:$0xf]
        %v1188 = vld [vmem:[%s1171 + $0x40] sm:$0xf]
        %v1189 = vld [vmem:[%s1171 + $0x44] sm:$0xf]
        %v1190 = vld [vmem:[%s1171 + $0x48] sm:$0xf]
        %v1191 = vld [vmem:[%s1171 + $0x4c] sm:$0xf]
        %v1192 = vld [vmem:[%s1171 + $0x50] sm:$0xf]
        %v1193 = vld [vmem:[%s1171 + $0x54] sm:$0xf]
        %v1194 = vld [vmem:[%s1171 + $0x58] sm:$0xf]
        %v1195 = vld [vmem:[%s1171 + $0x5c] sm:$0xf]
        %v1196 = vld [vmem:[%s1171 + $0x60] sm:$0xf]
        %v1197 = vld [vmem:[%s1171 + $0x64] sm:$0xf]
        %v1198 = vld [vmem:[%s1171 + $0x68] sm:$0xf]
        %v1199 = vld [vmem:[%s1171 + $0x6c] sm:$0xf]
        %v1200 = vld [vmem:[%s1171 + $0x70] sm:$0xf]
        %v1201 = vld [vmem:[%s1171 + $0x74] sm:$0xf]
        %v1202 = vld [vmem:[%s1171 + $0x78] sm:$0xf]
        %v1203 = vld [vmem:[%s1171 + $0x7c] sm:$0xf]
        %v1236 = vunpack.c.l.b16 %v1172
        %v1237 = vunpack.c.l.b16 %v1173
        %v1238 = vunpack.c.l.b16 %v1174
        %v1239 = vunpack.c.l.b16 %v1175
        %v1240 = vunpack.c.l.b16 %v1176
        %v1241 = vunpack.c.l.b16 %v1177
        %v1242 = vunpack.c.l.b16 %v1178
        %v1243 = vunpack.c.l.b16 %v1179
        %v1244 = vunpack.c.l.b16 %v1180
        %v1245 = vunpack.c.l.b16 %v1181
        %v1246 = vunpack.c.l.b16 %v1182
        %v1247 = vunpack.c.l.b16 %v1183
        %v1248 = vunpack.c.l.b16 %v1184
        %v1249 = vunpack.c.l.b16 %v1185
        %v1250 = vunpack.c.l.b16 %v1186
        %v1251 = vunpack.c.l.b16 %v1187
        %v1252 = vunpack.c.l.b16 %v1188
        %v1253 = vunpack.c.l.b16 %v1189
        %v1254 = vunpack.c.l.b16 %v1190
        %v1255 = vunpack.c.l.b16 %v1191
        %v1256 = vunpack.c.l.b16 %v1192
        %v1257 = vunpack.c.l.b16 %v1193
        %v1258 = vunpack.c.l.b16 %v1194
        %v1259 = vunpack.c.l.b16 %v1195
        %v1260 = vunpack.c.l.b16 %v1196
        %v1261 = vunpack.c.l.b16 %v1197
        %v1262 = vunpack.c.l.b16 %v1198
        %v1263 = vunpack.c.l.b16 %v1199
        %v1264 = vunpack.c.l.b16 %v1200
        %v1265 = vunpack.c.l.b16 %v1201
        %v1266 = vunpack.c.l.b16 %v1202
        %v1267 = vunpack.c.l.b16 %v1203
        %v1268 = vpack.c.b16 %v1237, %v1236
        %v1269 = vpack.c.b16 %v1239, %v1238
        %v1270 = vpack.c.b16 %v1241, %v1240
        %v1271 = vpack.c.b16 %v1243, %v1242
        %v1272 = vpack.c.b16 %v1245, %v1244
        %v1273 = vpack.c.b16 %v1247, %v1246
        %v1274 = vpack.c.b16 %v1249, %v1248
        %v1275 = vpack.c.b16 %v1251, %v1250
        %v1276 = vpack.c.b16 %v1253, %v1252
        %v1277 = vpack.c.b16 %v1255, %v1254
        %v1278 = vpack.c.b16 %v1257, %v1256
        %v1279 = vpack.c.b16 %v1259, %v1258
        %v1280 = vpack.c.b16 %v1261, %v1260
        %v1281 = vpack.c.b16 %v1263, %v1262
        %v1282 = vpack.c.b16 %v1265, %v1264
        %v1283 = vpack.c.b16 %v1267, %v1266
        %v1286 = vunpack.c.l.b16 %v507
        %v1287 = vunpack.c.l.b16 %v508
        %v1288 = vpack.c.b16 %v1287, %v1286
        %v1290 = vsel %vm660, %v1268, 0
        %v1293 = vsel %vm660, %v1269, 0
        %v1296 = vsel %vm660, %v1270, 0
        %v1299 = vsel %vm660, %v1271, 0
        %v1302 = vsel %vm660, %v1272, 0
        %v1305 = vsel %vm660, %v1273, 0
        %v1308 = vsel %vm660, %v1274, 0
        %v1311 = vsel %vm660, %v1275, 0
        %v1314 = vsel %vm660, %v1276, 0
        %v1317 = vsel %vm660, %v1277, 0
        %v1320 = vsel %vm660, %v1278, 0
        %v1323 = vsel %vm660, %v1279, 0
        %v1326 = vsel %vm660, %v1280, 0
        %v1329 = vsel %vm660, %v1281, 0
        %v1332 = vsel %vm660, %v1282, 0
        %v1335 = vsel %vm660, %v1283, 0
        %v1338 = vsel %vm709, %v1288, 0
        %1340 = vmatprep.subr.bf16.mxu0 0
        %1341 = vmatpush1.bf16.msra.mxu0 0
        %1342 = vmatprep.subr.bf16.mxu0 0
        %1343 = vmatpush1.bf16.msra.mxu0 0
        %1344 = vmatprep.subr.bf16.mxu0 0
        %1345 = vmatpush1.bf16.msra.mxu0 0
        %1346 = vmatprep.subr.bf16.mxu0 0
        %1347 = vmatpush1.bf16.msra.mxu0 0
        %1348 = vmatprep.subr.bf16.mxu0 0
        %1349 = vmatpush1.bf16.msra.mxu0 0
        %1350 = vmatprep.subr.bf16.mxu0 0
        %1351 = vmatpush1.bf16.msra.mxu0 0
        %1352 = vmatprep.subr.bf16.mxu0 0
        %1353 = vmatpush1.bf16.msra.mxu0 0
        %1354 = vmatprep.subr.bf16.mxu0 0
        %1355 = vmatpush1.bf16.msra.mxu0 %v1338
        %1356 = vmatprep.subr.bf16.mxu0 0
        %1357 = vmatpush2.bf16.msra.mxu0 0
        %1358 = vmatprep.subr.bf16.mxu0 0
        %1359 = vmatpush2.bf16.msra.mxu0 0
        %1360 = vmatprep.subr.bf16.mxu0 0
        %1361 = vmatpush2.bf16.msra.mxu0 0
        %1362 = vmatprep.subr.bf16.mxu0 0
        %1363 = vmatpush2.bf16.msra.mxu0 0
        %1364 = vmatprep.subr.bf16.mxu0 0
        %1365 = vmatpush2.bf16.msra.mxu0 0
        %1366 = vmatprep.subr.bf16.mxu0 0
        %1367 = vmatpush2.bf16.msra.mxu0 0
        %1368 = vmatprep.subr.bf16.mxu0 0
        %1369 = vmatpush2.bf16.msra.mxu0 0
        %1370 = vmatprep.subr.bf16.mxu0 0
        %1371 = vmatpush2.bf16.msra.mxu0 0
        %1372 = vmatprep.mubr.bf16.mxu0 0
        %1373 = vmatmul.mubr.bf16.gmra.mxu0 %v1290
        %v1374 = vpop.f32.mrf.mxu0
        %v1375 = vadd.f32 0.0, %v1374
        %v1376 = vpop.f32.mrf.mxu0
        %v1377 = vpop.f32.mrf.mxu0
        %v1378 = vadd.f32 0.0, %v1377
        %v1379 = vpop.f32.mrf.mxu0
        %1380 = vmatprep.mubr.bf16.mxu0 0
        %1381 = vmatmul.mubr.bf16.gmra.mxu0 %v1293
        %v1382 = vpop.f32.mrf.mxu0
        %v1383 = vadd.f32 0.0, %v1382
        %v1384 = vpop.f32.mrf.mxu0
        %v1385 = vpop.f32.mrf.mxu0
        %v1386 = vadd.f32 0.0, %v1385
        %v1387 = vpop.f32.mrf.mxu0
        %1388 = vmatprep.mubr.bf16.mxu0 0
        %1389 = vmatmul.mubr.bf16.gmra.mxu0 %v1296
        %v1390 = vpop.f32.mrf.mxu0
        %v1391 = vadd.f32 0.0, %v1390
        %v1392 = vpop.f32.mrf.mxu0
        %v1393 = vpop.f32.mrf.mxu0
        %v1394 = vadd.f32 0.0, %v1393
        %v1395 = vpop.f32.mrf.mxu0
        %1396 = vmatprep.mubr.bf16.mxu0 0
        %1397 = vmatmul.mubr.bf16.gmra.mxu0 %v1299
        %v1398 = vpop.f32.mrf.mxu0
        %v1399 = vadd.f32 0.0, %v1398
        %v1400 = vpop.f32.mrf.mxu0
        %v1401 = vpop.f32.mrf.mxu0
        %v1402 = vadd.f32 0.0, %v1401
        %v1403 = vpop.f32.mrf.mxu0
        %1404 = vmatprep.mubr.bf16.mxu0 0
        %1405 = vmatmul.mubr.bf16.gmra.mxu0 %v1302
        %v1406 = vpop.f32.mrf.mxu0
        %v1407 = vadd.f32 0.0, %v1406
        %v1408 = vpop.f32.mrf.mxu0
        %v1409 = vpop.f32.mrf.mxu0
        %v1410 = vadd.f32 0.0, %v1409
        %v1411 = vpop.f32.mrf.mxu0
        %1412 = vmatprep.mubr.bf16.mxu0 0
        %1413 = vmatmul.mubr.bf16.gmra.mxu0 %v1305
        %v1414 = vpop.f32.mrf.mxu0
        %v1415 = vadd.f32 0.0, %v1414
        %v1416 = vpop.f32.mrf.mxu0
        %v1417 = vpop.f32.mrf.mxu0
        %v1418 = vadd.f32 0.0, %v1417
        %v1419 = vpop.f32.mrf.mxu0
        %1420 = vmatprep.mubr.bf16.mxu0 0
        %1421 = vmatmul.mubr.bf16.gmra.mxu0 %v1308
        %v1422 = vpop.f32.mrf.mxu0
        %v1423 = vadd.f32 0.0, %v1422
        %v1424 = vpop.f32.mrf.mxu0
        %v1425 = vpop.f32.mrf.mxu0
        %v1426 = vadd.f32 0.0, %v1425
        %v1427 = vpop.f32.mrf.mxu0
        %1428 = vmatprep.mubr.bf16.mxu0 0
        %1429 = vmatmul.mubr.bf16.gmra.mxu0 %v1311
        %v1430 = vpop.f32.mrf.mxu0
        %v1431 = vadd.f32 0.0, %v1430
        %v1432 = vpop.f32.mrf.mxu0
        %v1433 = vpop.f32.mrf.mxu0
        %v1434 = vadd.f32 0.0, %v1433
        %v1435 = vpop.f32.mrf.mxu0
        %1436 = vmatprep.mubr.bf16.mxu0 0
        %1437 = vmatmul.mubr.bf16.gmra.mxu0 %v1314
        %v1438 = vpop.f32.mrf.mxu0
        %v1439 = vadd.f32 0.0, %v1438
        %v1440 = vpop.f32.mrf.mxu0
        %v1441 = vpop.f32.mrf.mxu0
        %v1442 = vadd.f32 0.0, %v1441
        %v1443 = vpop.f32.mrf.mxu0
        %1444 = vmatprep.mubr.bf16.mxu0 0
        %1445 = vmatmul.mubr.bf16.gmra.mxu0 %v1317
        %v1446 = vpop.f32.mrf.mxu0
        %v1447 = vadd.f32 0.0, %v1446
        %v1448 = vpop.f32.mrf.mxu0
        %v1449 = vpop.f32.mrf.mxu0
        %v1450 = vadd.f32 0.0, %v1449
        %v1451 = vpop.f32.mrf.mxu0
        %1452 = vmatprep.mubr.bf16.mxu0 0
        %1453 = vmatmul.mubr.bf16.gmra.mxu0 %v1320
        %v1454 = vpop.f32.mrf.mxu0
        %v1455 = vadd.f32 0.0, %v1454
        %v1456 = vpop.f32.mrf.mxu0
        %v1457 = vpop.f32.mrf.mxu0
        %v1458 = vadd.f32 0.0, %v1457
        %v1459 = vpop.f32.mrf.mxu0
        %1460 = vmatprep.mubr.bf16.mxu0 0
        %1461 = vmatmul.mubr.bf16.gmra.mxu0 %v1323
        %v1462 = vpop.f32.mrf.mxu0
        %v1463 = vadd.f32 0.0, %v1462
        %v1464 = vpop.f32.mrf.mxu0
        %v1465 = vpop.f32.mrf.mxu0
        %v1466 = vadd.f32 0.0, %v1465
        %v1467 = vpop.f32.mrf.mxu0
        %1468 = vmatprep.mubr.bf16.mxu0 0
        %1469 = vmatmul.mubr.bf16.gmra.mxu0 %v1326
        %v1470 = vpop.f32.mrf.mxu0
        %v1471 = vadd.f32 0.0, %v1470
        %v1472 = vpop.f32.mrf.mxu0
        %v1473 = vpop.f32.mrf.mxu0
        %v1474 = vadd.f32 0.0, %v1473
        %v1475 = vpop.f32.mrf.mxu0
        %1476 = vmatprep.mubr.bf16.mxu0 0
        %1477 = vmatmul.mubr.bf16.gmra.mxu0 %v1329
        %v1478 = vpop.f32.mrf.mxu0
        %v1479 = vadd.f32 0.0, %v1478
        %v1480 = vpop.f32.mrf.mxu0
        %v1481 = vpop.f32.mrf.mxu0
        %v1482 = vadd.f32 0.0, %v1481
        %v1483 = vpop.f32.mrf.mxu0
        %1484 = vmatprep.mubr.bf16.mxu0 0
        %1485 = vmatmul.mubr.bf16.gmra.mxu0 %v1332
        %v1486 = vpop.f32.mrf.mxu0
        %v1487 = vadd.f32 0.0, %v1486
        %v1488 = vpop.f32.mrf.mxu0
        %v1489 = vpop.f32.mrf.mxu0
        %v1490 = vadd.f32 0.0, %v1489
        %v1491 = vpop.f32.mrf.mxu0
        %1492 = vmatprep.mubr.bf16.mxu0 0
        %1493 = vmatmul.mubr.bf16.gmra.mxu0 %v1335
        %v1494 = vpop.f32.mrf.mxu0
        %v1495 = vadd.f32 0.0, %v1494
        %v1496 = vpop.f32.mrf.mxu0
        %v1497 = vpop.f32.mrf.mxu0
        %v1498 = vadd.f32 0.0, %v1497
        %v1499 = vpop.f32.mrf.mxu0
        %1500 = vdwg.mxu0
        %v1501 = vadd.f32 %v1045, %v1375
        %v1502 = vadd.f32 %v1048, %v1378
        %v1503 = vadd.f32 %v1053, %v1383
        %v1504 = vadd.f32 %v1056, %v1386
        %v1505 = vadd.f32 %v1061, %v1391
        %v1506 = vadd.f32 %v1064, %v1394
        %v1507 = vadd.f32 %v1069, %v1399
        %v1508 = vadd.f32 %v1072, %v1402
        %v1509 = vadd.f32 %v1077, %v1407
        %v1510 = vadd.f32 %v1080, %v1410
        %v1511 = vadd.f32 %v1085, %v1415
        %v1512 = vadd.f32 %v1088, %v1418
        %v1513 = vadd.f32 %v1093, %v1423
        %v1514 = vadd.f32 %v1096, %v1426
        %v1515 = vadd.f32 %v1101, %v1431
        %v1516 = vadd.f32 %v1104, %v1434
        %v1517 = vadd.f32 %v1109, %v1439
        %v1518 = vadd.f32 %v1112, %v1442
        %v1519 = vadd.f32 %v1117, %v1447
        %v1520 = vadd.f32 %v1120, %v1450
        %v1521 = vadd.f32 %v1125, %v1455
        %v1522 = vadd.f32 %v1128, %v1458
        %v1523 = vadd.f32 %v1133, %v1463
        %v1524 = vadd.f32 %v1136, %v1466
        %v1525 = vadd.f32 %v1141, %v1471
        %v1526 = vadd.f32 %v1144, %v1474
        %v1527 = vadd.f32 %v1149, %v1479
        %v1528 = vadd.f32 %v1152, %v1482
        %v1529 = vadd.f32 %v1157, %v1487
        %v1530 = vadd.f32 %v1160, %v1490
        %v1531 = vadd.f32 %v1165, %v1495
        %v1532 = vadd.f32 %v1168, %v1498
        %v1534 = vlaneseq
        %v1535 = vshrl.u32 %v1534, 7
        %v1536 = vsub.s32 0, %v1535
        %v1537 = vrot.slane %v509, %v1536
        %v1539 = vadd.f32 %v1501, %v1537
        %v1540 = vadd.f32 %v1502, %v1537
        %v1541 = vadd.f32 %v1503, %v1537
        %v1542 = vadd.f32 %v1504, %v1537
        %v1543 = vadd.f32 %v1505, %v1537
        %v1544 = vadd.f32 %v1506, %v1537
        %v1545 = vadd.f32 %v1507, %v1537
        %v1546 = vadd.f32 %v1508, %v1537
        %v1547 = vadd.f32 %v1509, %v1537
        %v1548 = vadd.f32 %v1510, %v1537
        %v1549 = vadd.f32 %v1511, %v1537
        %v1550 = vadd.f32 %v1512, %v1537
        %v1551 = vadd.f32 %v1513, %v1537
        %v1552 = vadd.f32 %v1514, %v1537
        %v1553 = vadd.f32 %v1515, %v1537
        %v1554 = vadd.f32 %v1516, %v1537
        %v1555 = vadd.f32 %v1517, %v1537
        %v1556 = vadd.f32 %v1518, %v1537
        %v1557 = vadd.f32 %v1519, %v1537
        %v1558 = vadd.f32 %v1520, %v1537
        %v1559 = vadd.f32 %v1521, %v1537
        %v1560 = vadd.f32 %v1522, %v1537
        %v1561 = vadd.f32 %v1523, %v1537
        %v1562 = vadd.f32 %v1524, %v1537
        %v1563 = vadd.f32 %v1525, %v1537
        %v1564 = vadd.f32 %v1526, %v1537
        %v1565 = vadd.f32 %v1527, %v1537
        %v1566 = vadd.f32 %v1528, %v1537
        %v1567 = vadd.f32 %v1529, %v1537
        %v1568 = vadd.f32 %v1530, %v1537
        %v1569 = vadd.f32 %v1531, %v1537
        %v1570 = vadd.f32 %v1532, %v1537
        %v1571 = vmax.f32 %v1539, 0.0
        %v1572 = vmax.f32 %v1540, 0.0
        %v1573 = vmax.f32 %v1541, 0.0
        %v1574 = vmax.f32 %v1542, 0.0
        %v1575 = vmax.f32 %v1543, 0.0
        %v1576 = vmax.f32 %v1544, 0.0
        %v1577 = vmax.f32 %v1545, 0.0
        %v1578 = vmax.f32 %v1546, 0.0
        %v1579 = vmax.f32 %v1547, 0.0
        %v1580 = vmax.f32 %v1548, 0.0
        %v1581 = vmax.f32 %v1549, 0.0
        %v1582 = vmax.f32 %v1550, 0.0
        %v1583 = vmax.f32 %v1551, 0.0
        %v1584 = vmax.f32 %v1552, 0.0
        %v1585 = vmax.f32 %v1553, 0.0
        %v1586 = vmax.f32 %v1554, 0.0
        %v1587 = vmax.f32 %v1555, 0.0
        %v1588 = vmax.f32 %v1556, 0.0
        %v1589 = vmax.f32 %v1557, 0.0
        %v1590 = vmax.f32 %v1558, 0.0
        %v1591 = vmax.f32 %v1559, 0.0
        %v1592 = vmax.f32 %v1560, 0.0
        %v1593 = vmax.f32 %v1561, 0.0
        %v1594 = vmax.f32 %v1562, 0.0
        %v1595 = vmax.f32 %v1563, 0.0
        %v1596 = vmax.f32 %v1564, 0.0
        %v1597 = vmax.f32 %v1565, 0.0
        %v1598 = vmax.f32 %v1566, 0.0
        %v1599 = vmax.f32 %v1567, 0.0
        %v1600 = vmax.f32 %v1568, 0.0
        %v1601 = vmax.f32 %v1569, 0.0
        %v1602 = vmax.f32 %v1570, 0.0
        %v1603 = vadd.f32 %v1571, %v1572
        %v1604 = vadd.f32 %v1603, %v1573
        %v1605 = vadd.f32 %v1604, %v1574
        %v1606 = vadd.f32 %v1605, %v1575
        %v1607 = vadd.f32 %v1606, %v1576
        %v1608 = vadd.f32 %v1607, %v1577
        %v1609 = vadd.f32 %v1608, %v1578
        %v1610 = vadd.f32 %v1609, %v1579
        %v1611 = vadd.f32 %v1610, %v1580
        %v1612 = vadd.f32 %v1611, %v1581
        %v1613 = vadd.f32 %v1612, %v1582
        %v1614 = vadd.f32 %v1613, %v1583
        %v1615 = vadd.f32 %v1614, %v1584
        %v1616 = vadd.f32 %v1615, %v1585
        %v1617 = vadd.f32 %v1616, %v1586
        %v1618 = vadd.f32 %v1617, %v1587
        %v1619 = vadd.f32 %v1618, %v1588
        %v1620 = vadd.f32 %v1619, %v1589
        %v1621 = vadd.f32 %v1620, %v1590
        %v1622 = vadd.f32 %v1621, %v1591
        %v1623 = vadd.f32 %v1622, %v1592
        %v1624 = vadd.f32 %v1623, %v1593
        %v1625 = vadd.f32 %v1624, %v1594
        %v1626 = vadd.f32 %v1625, %v1595
        %v1627 = vadd.f32 %v1626, %v1596
        %v1628 = vadd.f32 %v1627, %v1597
        %v1629 = vadd.f32 %v1628, %v1598
        %v1630 = vadd.f32 %v1629, %v1599
        %v1631 = vadd.f32 %v1630, %v1600
        %v1632 = vadd.f32 %v1631, %v1601
        %v1633 = vadd.f32 %v1632, %v1602
        %v1634 = vrot.slane %v1633, 4
        %v1635 = vadd.f32 %v1633, %v1634
        %v1636 = vrot.slane %v1635, 2
        %v1637 = vadd.f32 %v1635, %v1636
        %v1638 = vrot.slane %v1637, 1
        %v1639 = vadd.f32 %v1637, %v1638
        %v1640 = vadd.f32 %v1639, 0.0
        %v1641 = vmul.f32 %v1640, 0.00390625
        %v1642 = vpack.c.bf16 %v1641, %v1641
        %v1643 = vld [vmem:[%s5] sm:$0xf]
        %v1644 = vld [vmem:[%s5 + $0x4] sm:$0xf]
        %v1645 = vld [vmem:[%s5 + $0x8] sm:$0xf]
        %v1646 = vld [vmem:[%s5 + $0xc] sm:$0xf]
        %v1647 = vld [vmem:[%s5 + $0x10] sm:$0xf]
        %v1648 = vld [vmem:[%s5 + $0x14] sm:$0xf]
        %v1649 = vld [vmem:[%s5 + $0x18] sm:$0xf]
        %v1650 = vld [vmem:[%s5 + $0x1c] sm:$0xf]
        %v1651 = vld [vmem:[%s5 + $0x20] sm:$0xf]
        %v1652 = vld [vmem:[%s5 + $0x24] sm:$0xf]
        %v1653 = vld [vmem:[%s5 + $0x28] sm:$0xf]
        %v1654 = vld [vmem:[%s5 + $0x2c] sm:$0xf]
        %v1655 = vld [vmem:[%s5 + $0x30] sm:$0xf]
        %v1656 = vld [vmem:[%s5 + $0x34] sm:$0xf]
        %v1657 = vld [vmem:[%s5 + $0x38] sm:$0xf]
        %v1658 = vld [vmem:[%s5 + $0x3c] sm:$0xf]
        %v1659 = vld [vmem:[%s6] sm:$0x1]
        %v1676 = vunpack.c.l.b16 %v1643
        %v1677 = vunpack.c.l.b16 %v1644
        %v1678 = vunpack.c.l.b16 %v1645
        %v1679 = vunpack.c.l.b16 %v1646
        %v1680 = vunpack.c.l.b16 %v1647
        %v1681 = vunpack.c.l.b16 %v1648
        %v1682 = vunpack.c.l.b16 %v1649
        %v1683 = vunpack.c.l.b16 %v1650
        %v1684 = vunpack.c.l.b16 %v1651
        %v1685 = vunpack.c.l.b16 %v1652
        %v1686 = vunpack.c.l.b16 %v1653
        %v1687 = vunpack.c.l.b16 %v1654
        %v1688 = vunpack.c.l.b16 %v1655
        %v1689 = vunpack.c.l.b16 %v1656
        %v1690 = vunpack.c.l.b16 %v1657
        %v1691 = vunpack.c.l.b16 %v1658
        %v1692 = vpack.c.b16 %v1677, %v1676
        %v1693 = vpack.c.b16 %v1679, %v1678
        %v1694 = vpack.c.b16 %v1681, %v1680
        %v1695 = vpack.c.b16 %v1683, %v1682
        %v1696 = vpack.c.b16 %v1685, %v1684
        %v1697 = vpack.c.b16 %v1687, %v1686
        %v1698 = vpack.c.b16 %v1689, %v1688
        %v1699 = vpack.c.b16 %v1691, %v1690
        %1708 = vmatprep.subr.bf16.mxu0 0
        %1709 = vmatpush1.bf16.msra.mxu0 %v1699
        %1710 = vmatprep.subr.bf16.mxu0 0
        %1711 = vmatpush1.bf16.msra.mxu0 %v1698
        %1712 = vmatprep.subr.bf16.mxu0 0
        %1713 = vmatpush1.bf16.msra.mxu0 %v1697
        %1714 = vmatprep.subr.bf16.mxu0 0
        %1715 = vmatpush1.bf16.msra.mxu0 %v1696
        %1716 = vmatprep.subr.bf16.mxu0 0
        %1717 = vmatpush1.bf16.msra.mxu0 %v1695
        %1718 = vmatprep.subr.bf16.mxu0 0
        %1719 = vmatpush1.bf16.msra.mxu0 %v1694
        %1720 = vmatprep.subr.bf16.mxu0 0
        %1721 = vmatpush1.bf16.msra.mxu0 %v1693
        %1722 = vmatprep.subr.bf16.mxu0 0
        %1723 = vmatpush1.bf16.msra.mxu0 %v1692
        %1724 = vmatprep.subr.bf16.mxu0 0
        %1725 = vmatpush2.bf16.msra.mxu0 0
        %1726 = vmatprep.subr.bf16.mxu0 0
        %1727 = vmatpush2.bf16.msra.mxu0 0
        %1728 = vmatprep.subr.bf16.mxu0 0
        %1729 = vmatpush2.bf16.msra.mxu0 0
        %1730 = vmatprep.subr.bf16.mxu0 0
        %1731 = vmatpush2.bf16.msra.mxu0 0
        %1732 = vmatprep.subr.bf16.mxu0 0
        %1733 = vmatpush2.bf16.msra.mxu0 0
        %1734 = vmatprep.subr.bf16.mxu0 0
        %1735 = vmatpush2.bf16.msra.mxu0 0
        %1736 = vmatprep.subr.bf16.mxu0 0
        %1737 = vmatpush2.bf16.msra.mxu0 0
        %1738 = vmatprep.subr.bf16.mxu0 0
        %1739 = vmatpush2.bf16.msra.mxu0 0
        %1740 = vmatprep.mubr.bf16.mxu0 0
        %1741 = vmatmul.mubr.bf16.gmra.mxu0 %v1642
        %v1742 = vpop.f32.mrf.mxu0
        %v1743 = vadd.f32 %v1659, %v1742
        %v1744 = vpop.f32.mrf.mxu0
        %v1745 = vpop.f32.mrf.mxu0
        %v1746 = vpop.f32.mrf.mxu0
        %1747 = vdwg.mxu0
        %v1748 = vmax.f32 %v1743, 0.0
        %v1749 = vpack.c.bf16 %v1748, %v1748
        %v1750 = vld [vmem:[%s7] sm:$0xf]
        %v1751 = vld [vmem:[%s7 + $0x4] sm:$0xf]
        %v1752 = vld [vmem:[%s7 + $0x8] sm:$0xf]
        %v1753 = vld [vmem:[%s7 + $0xc] sm:$0xf]
        %v1754 = vld [vmem:[%s7 + $0x10] sm:$0xf]
        %v1755 = vld [vmem:[%s7 + $0x14] sm:$0xf]
        %v1756 = vld [vmem:[%s7 + $0x18] sm:$0xf]
        %v1757 = vld [vmem:[%s7 + $0x1c] sm:$0xf]
        %v1758 = vld [vmem:[%s7 + $0x20] sm:$0xf]
        %v1759 = vld [vmem:[%s7 + $0x24] sm:$0xf]
        %v1760 = vld [vmem:[%s7 + $0x28] sm:$0xf]
        %v1761 = vld [vmem:[%s7 + $0x2c] sm:$0xf]
        %v1762 = vld [vmem:[%s7 + $0x30] sm:$0xf]
        %v1763 = vld [vmem:[%s7 + $0x34] sm:$0xf]
        %v1764 = vld [vmem:[%s7 + $0x38] sm:$0xf]
        %v1765 = vld [vmem:[%s7 + $0x3c] sm:$0xf]
        %v1766 = vld [vmem:[%s8] sm:$0x1]
        %v1783 = vunpack.c.l.b16 %v1750
        %v1784 = vunpack.c.l.b16 %v1751
        %v1785 = vunpack.c.l.b16 %v1752
        %v1786 = vunpack.c.l.b16 %v1753
        %v1787 = vunpack.c.l.b16 %v1754
        %v1788 = vunpack.c.l.b16 %v1755
        %v1789 = vunpack.c.l.b16 %v1756
        %v1790 = vunpack.c.l.b16 %v1757
        %v1791 = vunpack.c.l.b16 %v1758
        %v1792 = vunpack.c.l.b16 %v1759
        %v1793 = vunpack.c.l.b16 %v1760
        %v1794 = vunpack.c.l.b16 %v1761
        %v1795 = vunpack.c.l.b16 %v1762
        %v1796 = vunpack.c.l.b16 %v1763
        %v1797 = vunpack.c.l.b16 %v1764
        %v1798 = vunpack.c.l.b16 %v1765
        %v1799 = vpack.c.b16 %v1784, %v1783
        %v1800 = vpack.c.b16 %v1786, %v1785
        %v1801 = vpack.c.b16 %v1788, %v1787
        %v1802 = vpack.c.b16 %v1790, %v1789
        %v1803 = vpack.c.b16 %v1792, %v1791
        %v1804 = vpack.c.b16 %v1794, %v1793
        %v1805 = vpack.c.b16 %v1796, %v1795
        %v1806 = vpack.c.b16 %v1798, %v1797
        %1815 = vmatprep.subr.bf16.mxu0 0
        %1816 = vmatpush1.bf16.msra.mxu0 %v1806
        %1817 = vmatprep.subr.bf16.mxu0 0
        %1818 = vmatpush1.bf16.msra.mxu0 %v1805
        %1819 = vmatprep.subr.bf16.mxu0 0
        %1820 = vmatpush1.bf16.msra.mxu0 %v1804
        %1821 = vmatprep.subr.bf16.mxu0 0
        %1822 = vmatpush1.bf16.msra.mxu0 %v1803
        %1823 = vmatprep.subr.bf16.mxu0 0
        %1824 = vmatpush1.bf16.msra.mxu0 %v1802
        %1825 = vmatprep.subr.bf16.mxu0 0
        %1826 = vmatpush1.bf16.msra.mxu0 %v1801
        %1827 = vmatprep.subr.bf16.mxu0 0
        %1828 = vmatpush1.bf16.msra.mxu0 %v1800
        %1829 = vmatprep.subr.bf16.mxu0 0
        %1830 = vmatpush1.bf16.msra.mxu0 %v1799
        %1831 = vmatprep.subr.bf16.mxu0 0
        %1832 = vmatpush2.bf16.msra.mxu0 0
        %1833 = vmatprep.subr.bf16.mxu0 0
        %1834 = vmatpush2.bf16.msra.mxu0 0
        %1835 = vmatprep.subr.bf16.mxu0 0
        %1836 = vmatpush2.bf16.msra.mxu0 0
        %1837 = vmatprep.subr.bf16.mxu0 0
        %1838 = vmatpush2.bf16.msra.mxu0 0
        %1839 = vmatprep.subr.bf16.mxu0 0
        %1840 = vmatpush2.bf16.msra.mxu0 0
        %1841 = vmatprep.subr.bf16.mxu0 0
        %1842 = vmatpush2.bf16.msra.mxu0 0
        %1843 = vmatprep.subr.bf16.mxu0 0
        %1844 = vmatpush2.bf16.msra.mxu0 0
        %1845 = vmatprep.subr.bf16.mxu0 0
        %1846 = vmatpush2.bf16.msra.mxu0 0
        %1847 = vmatprep.mubr.bf16.mxu0 0
        %1848 = vmatmul.mubr.bf16.gmra.mxu0 %v1749
        %v1849 = vpop.f32.mrf.mxu0
        %v1850 = vadd.f32 %v1766, %v1849
        %v1851 = vpop.f32.mrf.mxu0
        %v1852 = vpop.f32.mrf.mxu0
        %v1853 = vpop.f32.mrf.mxu0
        %1854 = vdwg.mxu0
        %v1855 = vmax.f32 %v1850, 0.0
        %v1856 = vpack.c.bf16 %v1855, %v1855
        %v1857 = vld [vmem:[%s9] sm:$0xf]
        %v1858 = vld [vmem:[%s9 + $0x4] sm:$0xf]
        %v1859 = vld [vmem:[%s9 + $0x8] sm:$0xf]
        %v1860 = vld [vmem:[%s9 + $0xc] sm:$0xf]
        %v1861 = vld [vmem:[%s9 + $0x10] sm:$0xf]
        %v1862 = vld [vmem:[%s9 + $0x14] sm:$0xf]
        %v1863 = vld [vmem:[%s9 + $0x18] sm:$0xf]
        %v1864 = vld [vmem:[%s9 + $0x1c] sm:$0xf]
        %v1865 = vld [vmem:[%s9 + $0x20] sm:$0xf]
        %v1866 = vld [vmem:[%s9 + $0x24] sm:$0xf]
        %v1867 = vld [vmem:[%s9 + $0x28] sm:$0xf]
        %v1868 = vld [vmem:[%s9 + $0x2c] sm:$0xf]
        %v1869 = vld [vmem:[%s9 + $0x30] sm:$0xf]
        %v1870 = vld [vmem:[%s9 + $0x34] sm:$0xf]
        %v1871 = vld [vmem:[%s9 + $0x38] sm:$0xf]
        %v1872 = vld [vmem:[%s9 + $0x3c] sm:$0xf]
        %v1873 = vld [vmem:[%s10] sm:$0x1]
        %v1890 = vunpack.c.l.b16 %v1857
        %v1891 = vunpack.c.l.b16 %v1858
        %v1892 = vunpack.c.l.b16 %v1859
        %v1893 = vunpack.c.l.b16 %v1860
        %v1894 = vunpack.c.l.b16 %v1861
        %v1895 = vunpack.c.l.b16 %v1862
        %v1896 = vunpack.c.l.b16 %v1863
        %v1897 = vunpack.c.l.b16 %v1864
        %v1898 = vunpack.c.l.b16 %v1865
        %v1899 = vunpack.c.l.b16 %v1866
        %v1900 = vunpack.c.l.b16 %v1867
        %v1901 = vunpack.c.l.b16 %v1868
        %v1902 = vunpack.c.l.b16 %v1869
        %v1903 = vunpack.c.l.b16 %v1870
        %v1904 = vunpack.c.l.b16 %v1871
        %v1905 = vunpack.c.l.b16 %v1872
        %v1906 = vpack.c.b16 %v1891, %v1890
        %v1907 = vpack.c.b16 %v1893, %v1892
        %v1908 = vpack.c.b16 %v1895, %v1894
        %v1909 = vpack.c.b16 %v1897, %v1896
        %v1910 = vpack.c.b16 %v1899, %v1898
        %v1911 = vpack.c.b16 %v1901, %v1900
        %v1912 = vpack.c.b16 %v1903, %v1902
        %v1913 = vpack.c.b16 %v1905, %v1904
        %1922 = vmatprep.subr.bf16.mxu0 0
        %1923 = vmatpush1.bf16.msra.mxu0 %v1913
        %1924 = vmatprep.subr.bf16.mxu0 0
        %1925 = vmatpush1.bf16.msra.mxu0 %v1912
        %1926 = vmatprep.subr.bf16.mxu0 0
        %1927 = vmatpush1.bf16.msra.mxu0 %v1911
        %1928 = vmatprep.subr.bf16.mxu0 0
        %1929 = vmatpush1.bf16.msra.mxu0 %v1910
        %1930 = vmatprep.subr.bf16.mxu0 0
        %1931 = vmatpush1.bf16.msra.mxu0 %v1909
        %1932 = vmatprep.subr.bf16.mxu0 0
        %1933 = vmatpush1.bf16.msra.mxu0 %v1908
        %1934 = vmatprep.subr.bf16.mxu0 0
        %1935 = vmatpush1.bf16.msra.mxu0 %v1907
        %1936 = vmatprep.subr.bf16.mxu0 0
        %1937 = vmatpush1.bf16.msra.mxu0 %v1906
        %1938 = vmatprep.subr.bf16.mxu0 0
        %1939 = vmatpush2.bf16.msra.mxu0 0
        %1940 = vmatprep.subr.bf16.mxu0 0
        %1941 = vmatpush2.bf16.msra.mxu0 0
        %1942 = vmatprep.subr.bf16.mxu0 0
        %1943 = vmatpush2.bf16.msra.mxu0 0
        %1944 = vmatprep.subr.bf16.mxu0 0
        %1945 = vmatpush2.bf16.msra.mxu0 0
        %1946 = vmatprep.subr.bf16.mxu0 0
        %1947 = vmatpush2.bf16.msra.mxu0 0
        %1948 = vmatprep.subr.bf16.mxu0 0
        %1949 = vmatpush2.bf16.msra.mxu0 0
        %1950 = vmatprep.subr.bf16.mxu0 0
        %1951 = vmatpush2.bf16.msra.mxu0 0
        %1952 = vmatprep.subr.bf16.mxu0 0
        %1953 = vmatpush2.bf16.msra.mxu0 0
        %1954 = vmatprep.mubr.bf16.mxu0 0
        %1955 = vmatmul.mubr.bf16.gmra.mxu0 %v1856
        %v1956 = vpop.f32.mrf.mxu0
        %v1957 = vadd.f32 %v1873, %v1956
        %v1958 = vpop.f32.mrf.mxu0
        %v1959 = vpop.f32.mrf.mxu0
        %v1960 = vpop.f32.mrf.mxu0
        %1961 = vdwg.mxu0
        %v1962 = vld [vmem:[%s11] sm:$0xf]
        %v1963 = vld [vmem:[%s11 + $0x4] sm:$0xf]
        %v1964 = vld [vmem:[%s11 + $0x8] sm:$0xf]
        %v1965 = vld [vmem:[%s11 + $0xc] sm:$0xf]
        %v1966 = vld [vmem:[%s11 + $0x10] sm:$0xf]
        %v1967 = vld [vmem:[%s11 + $0x14] sm:$0xf]
        %v1968 = vld [vmem:[%s11 + $0x18] sm:$0xf]
        %v1969 = vld [vmem:[%s11 + $0x1c] sm:$0xf]
        %v1970 = vld [vmem:[%s11 + $0x20] sm:$0xf]
        %v1971 = vld [vmem:[%s11 + $0x24] sm:$0xf]
        %v1972 = vld [vmem:[%s11 + $0x28] sm:$0xf]
        %v1973 = vld [vmem:[%s11 + $0x2c] sm:$0xf]
        %v1974 = vld [vmem:[%s11 + $0x30] sm:$0xf]
        %v1975 = vld [vmem:[%s11 + $0x34] sm:$0xf]
        %v1976 = vld [vmem:[%s11 + $0x38] sm:$0xf]
        %v1977 = vld [vmem:[%s11 + $0x3c] sm:$0xf]
        %v1978 = vpack.c.bf16 %v1957, %v1957
        %v1979 = vld [vmem:[%s12] sm:$0xf]
        %v1980 = vld [vmem:[%s12 + $0x4] sm:$0xf]
        %v1981 = vld [vmem:[%s12 + $0x8] sm:$0xf]
        %v1982 = vld [vmem:[%s12 + $0xc] sm:$0xf]
        %v1983 = vld [vmem:[%s12 + $0x10] sm:$0xf]
        %v1984 = vld [vmem:[%s12 + $0x14] sm:$0xf]
        %v1985 = vld [vmem:[%s12 + $0x18] sm:$0xf]
        %v1986 = vld [vmem:[%s12 + $0x1c] sm:$0xf]
        %v1987 = vld [vmem:[%s12 + $0x20] sm:$0xf]
        %v1988 = vld [vmem:[%s12 + $0x24] sm:$0xf]
        %v1989 = vld [vmem:[%s12 + $0x28] sm:$0xf]
        %v1990 = vld [vmem:[%s12 + $0x2c] sm:$0xf]
        %v1991 = vld [vmem:[%s12 + $0x30] sm:$0xf]
        %v1992 = vld [vmem:[%s12 + $0x34] sm:$0xf]
        %v1993 = vld [vmem:[%s12 + $0x38] sm:$0xf]
        %v1994 = vld [vmem:[%s12 + $0x3c] sm:$0xf]
        %v2011 = vunpack.c.l.b16 %v1979
        %v2012 = vunpack.c.l.b16 %v1980
        %v2013 = vunpack.c.l.b16 %v1981
        %v2014 = vunpack.c.l.b16 %v1982
        %v2015 = vunpack.c.l.b16 %v1983
        %v2016 = vunpack.c.l.b16 %v1984
        %v2017 = vunpack.c.l.b16 %v1985
        %v2018 = vunpack.c.l.b16 %v1986
        %v2019 = vunpack.c.l.b16 %v1987
        %v2020 = vunpack.c.l.b16 %v1988
        %v2021 = vunpack.c.l.b16 %v1989
        %v2022 = vunpack.c.l.b16 %v1990
        %v2023 = vunpack.c.l.b16 %v1991
        %v2024 = vunpack.c.l.b16 %v1992
        %v2025 = vunpack.c.l.b16 %v1993
        %v2026 = vunpack.c.l.b16 %v1994
        %v2027 = vpack.c.b16 %v2012, %v2011
        %v2028 = vpack.c.b16 %v2014, %v2013
        %v2029 = vpack.c.b16 %v2016, %v2015
        %v2030 = vpack.c.b16 %v2018, %v2017
        %v2031 = vpack.c.b16 %v2020, %v2019
        %v2032 = vpack.c.b16 %v2022, %v2021
        %v2033 = vpack.c.b16 %v2024, %v2023
        %v2034 = vpack.c.b16 %v2026, %v2025
        %2043 = vmatprep.subr.bf16.mxu0 0
        %2044 = vmatpush1.bf16.msra.mxu0 %v2034
        %2045 = vmatprep.subr.bf16.mxu0 0
        %2046 = vmatpush1.bf16.msra.mxu0 %v2033
        %2047 = vmatprep.subr.bf16.mxu0 0
        %2048 = vmatpush1.bf16.msra.mxu0 %v2032
        %2049 = vmatprep.subr.bf16.mxu0 0
        %2050 = vmatpush1.bf16.msra.mxu0 %v2031
        %2051 = vmatprep.subr.bf16.mxu0 0
        %2052 = vmatpush1.bf16.msra.mxu0 %v2030
        %2053 = vmatprep.subr.bf16.mxu0 0
        %2054 = vmatpush1.bf16.msra.mxu0 %v2029
        %2055 = vmatprep.subr.bf16.mxu0 0
        %2056 = vmatpush1.bf16.msra.mxu0 %v2028
        %2057 = vmatprep.subr.bf16.mxu0 0
        %2058 = vmatpush1.bf16.msra.mxu0 %v2027
        %2059 = vmatprep.subr.bf16.mxu0 0
        %2060 = vmatpush2.bf16.msra.mxu0 0
        %2061 = vmatprep.subr.bf16.mxu0 0
        %2062 = vmatpush2.bf16.msra.mxu0 0
        %2063 = vmatprep.subr.bf16.mxu0 0
        %2064 = vmatpush2.bf16.msra.mxu0 0
        %2065 = vmatprep.subr.bf16.mxu0 0
        %2066 = vmatpush2.bf16.msra.mxu0 0
        %2067 = vmatprep.subr.bf16.mxu0 0
        %2068 = vmatpush2.bf16.msra.mxu0 0
        %2069 = vmatprep.subr.bf16.mxu0 0
        %2070 = vmatpush2.bf16.msra.mxu0 0
        %2071 = vmatprep.subr.bf16.mxu0 0
        %2072 = vmatpush2.bf16.msra.mxu0 0
        %2073 = vmatprep.subr.bf16.mxu0 0
        %2074 = vmatpush2.bf16.msra.mxu0 0
        %2075 = vmatprep.mubr.bf16.mxu0 0
        %2076 = vmatmul.mubr.bf16.gmra.mxu0 %v1978
        %v2077 = vpop.f32.mrf.mxu0
        %v2078 = vadd.f32 0.0, %v2077
        %v2079 = vpop.f32.mrf.mxu0
        %v2080 = vpop.f32.mrf.mxu0
        %v2081 = vpop.f32.mrf.mxu0
        %2082 = vdwg.mxu0
        %v2099 = vunpack.c.l.b16 %v1962
        %v2100 = vunpack.c.l.b16 %v1963
        %v2101 = vunpack.c.l.b16 %v1964
        %v2102 = vunpack.c.l.b16 %v1965
        %v2103 = vunpack.c.l.b16 %v1966
        %v2104 = vunpack.c.l.b16 %v1967
        %v2105 = vunpack.c.l.b16 %v1968
        %v2106 = vunpack.c.l.b16 %v1969
        %v2107 = vunpack.c.l.b16 %v1970
        %v2108 = vunpack.c.l.b16 %v1971
        %v2109 = vunpack.c.l.b16 %v1972
        %v2110 = vunpack.c.l.b16 %v1973
        %v2111 = vunpack.c.l.b16 %v1974
        %v2112 = vunpack.c.l.b16 %v1975
        %v2113 = vunpack.c.l.b16 %v1976
        %v2114 = vunpack.c.l.b16 %v1977
        %v2115 = vpack.c.b16 %v2100, %v2099
        %v2116 = vpack.c.b16 %v2102, %v2101
        %v2117 = vpack.c.b16 %v2104, %v2103
        %v2118 = vpack.c.b16 %v2106, %v2105
        %v2119 = vpack.c.b16 %v2108, %v2107
        %v2120 = vpack.c.b16 %v2110, %v2109
        %v2121 = vpack.c.b16 %v2112, %v2111
        %v2122 = vpack.c.b16 %v2114, %v2113
        %2131 = vmatprep.subr.bf16.mxu0 0
        %2132 = vmatpush1.bf16.msra.mxu0 %v2122
        %2133 = vmatprep.subr.bf16.mxu0 0
        %2134 = vmatpush1.bf16.msra.mxu0 %v2121
        %2135 = vmatprep.subr.bf16.mxu0 0
        %2136 = vmatpush1.bf16.msra.mxu0 %v2120
        %2137 = vmatprep.subr.bf16.mxu0 0
        %2138 = vmatpush1.bf16.msra.mxu0 %v2119
        %2139 = vmatprep.subr.bf16.mxu0 0
        %2140 = vmatpush1.bf16.msra.mxu0 %v2118
        %2141 = vmatprep.subr.bf16.mxu0 0
        %2142 = vmatpush1.bf16.msra.mxu0 %v2117
        %2143 = vmatprep.subr.bf16.mxu0 0
        %2144 = vmatpush1.bf16.msra.mxu0 %v2116
        %2145 = vmatprep.subr.bf16.mxu0 0
        %2146 = vmatpush1.bf16.msra.mxu0 %v2115
        %2147 = vmatprep.subr.bf16.mxu0 0
        %2148 = vmatpush2.bf16.msra.mxu0 0
        %2149 = vmatprep.subr.bf16.mxu0 0
        %2150 = vmatpush2.bf16.msra.mxu0 0
        %2151 = vmatprep.subr.bf16.mxu0 0
        %2152 = vmatpush2.bf16.msra.mxu0 0
        %2153 = vmatprep.subr.bf16.mxu0 0
        %2154 = vmatpush2.bf16.msra.mxu0 0
        %2155 = vmatprep.subr.bf16.mxu0 0
        %2156 = vmatpush2.bf16.msra.mxu0 0
        %2157 = vmatprep.subr.bf16.mxu0 0
        %2158 = vmatpush2.bf16.msra.mxu0 0
        %2159 = vmatprep.subr.bf16.mxu0 0
        %2160 = vmatpush2.bf16.msra.mxu0 0
        %2161 = vmatprep.subr.bf16.mxu0 0
        %2162 = vmatpush2.bf16.msra.mxu0 0
        %2163 = vmatprep.mubr.bf16.mxu0 0
        %2164 = vmatmul.mubr.bf16.gmra.mxu0 %v1642
        %v2165 = vpop.f32.mrf.mxu0
        %v2166 = vadd.f32 %v2078, %v2165
        %v2167 = vpop.f32.mrf.mxu0
        %v2168 = vpop.f32.mrf.mxu0
        %v2169 = vpop.f32.mrf.mxu0
        %2170 = vdwg.mxu0
        %v2171 = vld [vmem:[%s13] sm:$0x1]
        %v2172 = vadd.f32 %v2166, %v2171
        %2173 = vst [vmem:[%s490] sm:$0x1] %v1957
        %2174 = vst [vmem:[%s496] sm:$0x1] %v2172
        %s2175 = sand.u32 %s340, 1
        %s2176 = scalar_lea.sflag [#allocation3], %s2175
        %s2177 = sand.u32 %s340, 1
        %s2178 = scalar_lea.vmem [#allocation2], %s2177
        %s2179 = sand.u32 %s366, 1
        %s2180 = scalar_lea.sflag [#allocation5], %s2179
        %s2181 = sand.u32 %s366, 1
        %s2182 = scalar_lea.vmem [#allocation4], %s2181
        // Predicated region
        $region77: #{tpu_custom_call.1} parent=75 // pred_check
          %p2183 = pneg %p350
        $region78: #{tpu_custom_call.1} parent=75 // pred_check_branch
          %2185 = sbr.rel (%p2183) target = $region80
        $region79: #{tpu_custom_call.1} parent=75 // pred_region
          %s2187 = ssub.s32 16, 16
          %2188 = vsyncadd %s2176, %s2187
          %s2189 = smul.addr %s33, 16
          %s2190 = scalar_lea.hbm %s14, %s2189
          %s2192 = sshll.u32 %s2178, 4
          %s2193 = int_to_ptr.vmem [resolvable:$true] %s2192
          %2195 = dma.vmem_to_hbm [thread:$0]  %s2193, 16, %s2190, %s2176
        $region80: #{tpu_custom_call.1} parent=75 // pred_fallthru
          _
        // Predicated region
        $region81: #{tpu_custom_call.1} parent=75 // pred_check
          %p2196 = pneg %p376
        $region82: #{tpu_custom_call.1} parent=75 // pred_check_branch
          %2198 = sbr.rel (%p2196) target = $region84
        $region83: #{tpu_custom_call.1} parent=75 // pred_region
          %s2200 = ssub.s32 16, 16
          %2201 = vsyncadd %s2180, %s2200
          %s2202 = smul.addr %s33, 16
          %s2203 = scalar_lea.hbm %s15, %s2202
          %s2205 = sshll.u32 %s2182, 4
          %s2206 = int_to_ptr.vmem [resolvable:$true] %s2205
          %2208 = dma.vmem_to_hbm [thread:$0]  %s2206, 16, %s2203, %s2180
        $region84: #{tpu_custom_call.1} parent=75 // pred_fallthru
          _
      $region76: #{tpu_custom_call.1} parent=5 // pred_fallthru
        _
      %p2209 = scmp.le.s32.totalorder 2, %s28
      // Predicated region
      $region85: #{tpu_custom_call.1} parent=5 // pred_check
        %p2210 = pneg %p2209
      $region86: #{tpu_custom_call.1} parent=5 // pred_check_branch
        %2212 = sbr.rel (%p2210) target = $region88
      $region87: #{tpu_custom_call.1} parent=5 // pred_region
        %s2213 = ssub.s32 %s28, 2
        // Predicated region
        $region89: #{tpu_custom_call.1} parent=87 // pred_check
          %p2214 = pneg %p356
        $region90: #{tpu_custom_call.1} parent=87 // pred_check_branch
          %2216 = sbr.rel (%p2214) target = $region92
        $region91: #{tpu_custom_call.1} parent=87 // pred_region
          %s2217 = sand.u32 %s341, 1
          %s2218 = scalar_lea.sflag [#allocation3], %s2217
          %s2219 = sand.u32 %s341, 1
          %s2220 = scalar_lea.vmem [#allocation2], %s2219
          %2221 = dma.done %s2218, 16
        $region92: #{tpu_custom_call.1} parent=87 // pred_fallthru
          _
        // Predicated region
        $region93: #{tpu_custom_call.1} parent=87 // pred_check
          %p2222 = pneg %p382
        $region94: #{tpu_custom_call.1} parent=87 // pred_check_branch
          %2224 = sbr.rel (%p2222) target = $region96
        $region95: #{tpu_custom_call.1} parent=87 // pred_region
          %s2225 = sand.u32 %s367, 1
          %s2226 = scalar_lea.sflag [#allocation5], %s2225
          %s2227 = sand.u32 %s367, 1
          %s2228 = scalar_lea.vmem [#allocation4], %s2227
          %2229 = dma.done %s2226, 16
        $region96: #{tpu_custom_call.1} parent=87 // pred_fallthru
          _
      $region88: #{tpu_custom_call.1} parent=5 // pred_fallthru
        _
    $region6: #{tpu_custom_call.1} parent=1 // loop_footer
      %s32 = sadd.s32 1, %s28
    $region7: #{tpu_custom_call.1} parent=1 // loop_footer_branch
      %27 = sbr.rel target = $region3
    $region8: #{tpu_custom_call.1} parent=1 // loop_exit
      _
    %2230 = vsyncpa [#allocation3], 1
    %s2231 = scalar_lea.sflag [#allocation3], 1
    %2232 = vsyncpa %s2231, 1
    %2233 = vsyncpa [#allocation5], 1
    %s2234 = scalar_lea.sflag [#allocation5], 1
    %2235 = vsyncpa %s2234, 1

</llo_original>
